<compile_context>
chip_gen: v6e
topology: v6e:2x2x1
jax: 0.10.0
libtpu: 0.0.40
codegen_flags: <defaults>
</compile_context>

<pallas_src>
import functools

import numpy as np
import jax
import jax.numpy as jnp
from jax import lax
from jax.experimental import pallas as pl
from jax.experimental.pallas import tpu as pltpu


# ----------------------------------------------------------------------------
# Host-side, shape-only constants (built once at trace time; exact in bf16)
# ----------------------------------------------------------------------------
def _conv_tap_mask(h, w, cin):
    """(9*cin, h*w) 0/1 mask for a 3x3 / stride-1 / pad-1 conv on one image.

    Rows [idx*cin, (idx+1)*cin) hold the validity of tap idx = (dy+1)*3+(dx+1):
    1 iff the source pixel (y+dy, x+dx) lies inside the image.
    """
    yy, xx = np.meshgrid(np.arange(h), np.arange(w), indexing="ij")
    blocks = []
    for dy in (-1, 0, 1):
        for dx in (-1, 0, 1):
            ok = ((yy + dy >= 0) & (yy + dy < h) &
                  (xx + dx >= 0) & (xx + dx < w)).reshape(-1)
            blocks.append(np.repeat(ok[None, :], cin, axis=0))
    return np.concatenate(blocks, axis=0).astype(np.float32)


def _pool_matrix(h, w):
    """(h*w, (h//2)*(w//2)) matrix implementing nn.AvgPool2d(2, 2) per image."""
    ho, wo = h // 2, w // 2
    p = np.zeros((h * w, ho * wo), np.float32)
    for y in range(h):
        for x in range(w):
            p[y * w + x, (y // 2) * wo + (x // 2)] = 0.25
    return p


def _flatten_matrices(c, hw):
    """P:(hw, c*hw), D:(c, c*hw) so that flat = sum_axis0(D * (Y @ P)) flattens
    Y:(c, hw) into torch channel-major (c, h, w) order with no masked stores."""
    pm = np.zeros((hw, c * hw), np.float32)
    dm = np.zeros((c, c * hw), np.float32)
    for cc in range(c):
        for p in range(hw):
            pm[p, cc * hw + p] = 1.0
            dm[cc, cc * hw + p] = 1.0
    return pm, dm


# ----------------------------------------------------------------------------
# Fused kernel (one grid step == one image)
# ----------------------------------------------------------------------------
def _make_kernel(dims):
    (c0, h1, w1, c1, h2, w2, c2, h3, w3, c3, lin5) = dims
    hw1, hw2, hw3 = h1 * w1, h2 * w2, h3 * w3
    lin4 = c3 * hw3

    def assemble(xs_ref, x, cin, ww, hw):
        """Write the 9 spatially shifted copies of x (cin, hw) into the im2col
        scratch rows [idx*cin, (idx+1)*cin); the lane offset of each store IS
        the spatial shift."""
        idx = 0
        for dy in (-1, 0, 1):
            for dx in (-1, 0, 1):
                d = dy * ww + dx
                r0 = idx * cin
                if d == 0:
                    xs_ref[pl.ds(r0, cin), pl.ds(0, hw)] = x
                elif d > 0:
                    xs_ref[pl.ds(r0, cin), pl.ds(0, hw - d)] = x[:, d:]
                else:
                    xs_ref[pl.ds(r0, cin), pl.ds(-d, hw + d)] = x[:, :hw + d]
                idx += 1

    def conv3x3_tanh(xs_ref, x, wb_ref, mk_ref, cin, ww, hw):
        """3x3/s1/p1 conv + bias + tanh as ONE (cout, 9*cin) @ (9*cin, hw)
        MXU matmul over the im2col scratch."""
        assemble(xs_ref, x, cin, ww, hw)
        xs = xs_ref[pl.ds(0, 9 * cin), pl.ds(0, hw)]
        mk = mk_ref[...].astype(jnp.float32)
        # Select, not multiply: never-written scratch lanes may hold stale bits;
        # they are exactly the mask-0 lanes and select never touches them.
        xs = jnp.where(mk != 0.0, xs, 0.0)
        wb = wb_ref[...]                         # (cout, 9*cin + 1), bias last col
        y = jnp.dot(wb[:, :9 * cin], xs, preferred_element_type=jnp.float32)
        return jnp.tanh(y + wb[:, 9 * cin:9 * cin + 1])

    def kernel(x_ref, wb1_ref, mk1_ref, wb2_ref, mk2_ref, wb3_ref, mk3_ref,
               p1_ref, p2_ref, pd_ref, w4b_ref, w5b_ref, o_ref, xs_ref):
        x = x_ref[0]                                                  # (c0, hw1)

        # Conv1 + Tanh, AvgPool1 (pool == matmul with a constant 0.25 matrix).
        y = conv3x3_tanh(xs_ref, x, wb1_ref, mk1_ref, c0, w1, hw1)    # (c1, hw1)
        y = jnp.dot(y, p1_ref[...].astype(jnp.float32),
                    preferred_element_type=jnp.float32)               # (c1, hw2)
        # Conv2 + Tanh, AvgPool2.
        y = conv3x3_tanh(xs_ref, y, wb2_ref, mk2_ref, c1, w2, hw2)    # (c2, hw2)
        y = jnp.dot(y, p2_ref[...].astype(jnp.float32),
                    preferred_element_type=jnp.float32)               # (c2, hw3)
        # Conv3 + Tanh.
        y = conv3x3_tanh(xs_ref, y, wb3_ref, mk3_ref, c2, w3, hw3)    # (c3, hw3)

        # Flatten (c3, hw3) -> (1, c3*hw3) in torch (c, h, w) order via two
        # tiny constant matrices (matmul + select-sum; no masked lane stores).
        pd = pd_ref[...].astype(jnp.float32)
        pmat = pd[:hw3, :]                        # (hw3, c3*hw3)
        dmat = pd[hw3:hw3 + c3, :]                # (c3,  c3*hw3)
        flat = jnp.sum(
            dmat * jnp.dot(y, pmat, preferred_element_type=jnp.float32),
            axis=0, keepdims=True)                                     # (1, lin4)

        # Linear -> Tanh -> Dropout(identity) -> Linear -> Tanh.
        w4b = w4b_ref[...]                        # (lin4 + 1, lin5), bias last row
        z = jnp.tanh(jnp.dot(flat, w4b[:lin4, :],
                             preferred_element_type=jnp.float32)
                     + w4b[lin4:lin4 + 1, :])
        # TODO(synk): nn.Dropout(0.5) is identity here (eval-mode semantics).
        w5b = w5b_ref[...]                        # (lin5 + 1, 128), bias last row
        z = jnp.tanh(jnp.dot(z, w5b[:lin5, :],
                             preferred_element_type=jnp.float32)
                     + w5b[lin5:lin5 + 1, :])
        o_ref[0] = z                              # (1, 128) full-lane store

    return kernel


# ----------------------------------------------------------------------------
# Parameter preparation (done once, outside the forward pass)
# ----------------------------------------------------------------------------
def prepare_params(raw, nout_pad=128):
    """Pre-pack weights into the fused-kernel layouts (bias packed alongside)."""
    def conv_pack(w, b):
        cout, cin, kh, kw = w.shape
        assert kh == 3 and kw == 3, "fused kernel assumes 3x3 / stride-1 / pad-1"
        wf = jnp.transpose(w, (0, 2, 3, 1)).reshape(cout, kh * kw * cin)
        return jnp.concatenate([wf, b.reshape(cout, 1)], axis=1).astype(jnp.float32)

    lin5, lin4 = raw["w4"].shape
    nout = raw["w5"].shape[0]
    w4b = jnp.concatenate([raw["w4"].T, raw["b4"].reshape(1, lin5)],
                          axis=0).astype(jnp.float32)                 # (lin4+1, lin5)
    w5p = jnp.zeros((lin5, nout_pad), jnp.float32).at[:, :nout].set(raw["w5"].T)
    b5p = jnp.zeros((1, nout_pad), jnp.float32).at[:, :nout].set(
        raw["b5"].reshape(1, nout))
    w5b = jnp.concatenate([w5p, b5p], axis=0)                         # (lin5+1, 128)
    return {
        "wb1": conv_pack(raw["w1"], raw["b1"]),
        "wb2": conv_pack(raw["w2"], raw["b2"]),
        "wb3": conv_pack(raw["w3"], raw["b3"]),
        "w4b": w4b,
        "w5b": w5b,
        "nout": nout,
    }


# ----------------------------------------------------------------------------
# Forward pass: a single pallas_call, grid over the batch
# ----------------------------------------------------------------------------
def landslide_cnn_forward(x, params):
    n, c0, h1, w1 = x.shape
    c1 = params["wb1"].shape[0]
    c2 = params["wb2"].shape[0]
    c3 = params["wb3"].shape[0]
    lin5 = params["w4b"].shape[1]
    npad = params["w5b"].shape[1]
    nout = params["nout"]
    h2, w2 = h1 // 2, w1 // 2                   # after AvgPool2d(2, 2)
    h3, w3 = h2 // 2, w2 // 2
    hw1, hw2, hw3 = h1 * w1, h2 * w2, h3 * w3
    assert params["w4b"].shape[0] == c3 * hw3 + 1, "linear_size_4 mismatch"
    assert params["w5b"].shape[0] == lin5 + 1

    # Per-image (batch-independent) constants; 0/1 and 0.25 are exact in bf16.
    mk1 = jnp.asarray(_conv_tap_mask(h1, w1, c0), jnp.bfloat16)
    mk2 = jnp.asarray(_conv_tap_mask(h2, w2, c1), jnp.bfloat16)
    mk3 = jnp.asarray(_conv_tap_mask(h3, w3, c2), jnp.bfloat16)
    p1 = jnp.asarray(_pool_matrix(h1, w1), jnp.bfloat16)
    p2 = jnp.asarray(_pool_matrix(h2, w2), jnp.bfloat16)
    pmat, dmat = _flatten_matrices(c3, hw3)
    pd = jnp.asarray(np.concatenate([pmat, dmat], axis=0), jnp.bfloat16)

    # Only host glue: flatten the spatial dims (no transpose, no copies).
    x3d = x.reshape(n, c0, hw1)

    kernel = _make_kernel((c0, h1, w1, c1, h2, w2, c2, h3, w3, c3, lin5))

    args = (x3d, params["wb1"], mk1, params["wb2"], mk2, params["wb3"], mk3,
            p1, p2, pd, params["w4b"], params["w5b"])

    def _const_spec(a):
        zeros = (0,) * a.ndim
        return pl.BlockSpec(a.shape, lambda i, _z=zeros: _z)

    in_specs = [pl.BlockSpec((1, c0, hw1), lambda i: (i, 0, 0))]
    in_specs += [_const_spec(a) for a in args[1:]]

    out = pl.pallas_call(
        kernel,
        out_shape=jax.ShapeDtypeStruct((n, 1, npad), jnp.float32),
        grid=(n,),
        in_specs=in_specs,
        out_specs=pl.BlockSpec((1, 1, npad), lambda i: (i, 0, 0)),
        scratch_shapes=[
            pltpu.VMEM((9 * max(c0, c1, c2), hw1), jnp.float32),  # im2col scratch
        ],
        compiler_params=pltpu.CompilerParams(
            dimension_semantics=("parallel",)),   # v7x: images split across 2 TCs
    )(*args)
    return out.reshape(n, npad)[:, :nout]


# ----------------------------------------------------------------------------
# Pure-JAX reference (for correctness checking)
# ----------------------------------------------------------------------------
def landslide_cnn_reference(x, raw):
    prec = lax.Precision.HIGHEST

    def conv(y, w, b):
        out = lax.conv_general_dilated(
            y, w, window_strides=(1, 1), padding=((1, 1), (1, 1)),
            dimension_numbers=("NCHW", "OIHW", "NCHW"), precision=prec)
        return jnp.tanh(out + b.reshape(1, -1, 1, 1))

    def pool(y):
        nb, c, h, w = y.shape
        return y.reshape(nb, c, h // 2, 2, w // 2, 2).mean(axis=(3, 5))

    y = pool(conv(x, raw["w1"], raw["b1"]))
    y = pool(conv(y, raw["w2"], raw["b2"]))
    y = conv(y, raw["w3"], raw["b3"])
    y = y.reshape(y.shape[0], -1)
    y = jnp.tanh(jnp.dot(y, raw["w4"].T, precision=prec) + raw["b4"])
    y = jnp.tanh(jnp.dot(y, raw["w5"].T, precision=prec) + raw["b5"])
    return y


def make_params(key, size_c, f1, f2, f3, lin4, lin5, out):
    ks = jax.random.split(key, 10)
    s = 0.1
    return {
        "w1": s * jax.random.normal(ks[0], (f1, size_c, 3, 3), jnp.float32),
        "b1": s * jax.random.normal(ks[1], (f1,), jnp.float32),
        "w2": s * jax.random.normal(ks[2], (f2, f1, 3, 3), jnp.float32),
        "b2": s * jax.random.normal(ks[3], (f2,), jnp.float32),
        "w3": s * jax.random.normal(ks[4], (f3, f2, 3, 3), jnp.float32),
        "b3": s * jax.random.normal(ks[5], (f3,), jnp.float32),
        "w4": s * jax.random.normal(ks[6], (lin5, lin4), jnp.float32),
        "b4": s * jax.random.normal(ks[7], (lin5,), jnp.float32),
        "w5": s * jax.random.normal(ks[8], (out, lin5), jnp.float32),
        "b5": s * jax.random.normal(ks[9], (out,), jnp.float32),
    }


if __name__ == "__main__":
    # Module hyper-parameters (consistent with the forward pass):
    #   size_c=4, filter_n_{1,2,3}=8, kernel=3, stride=1, pad=1, pools=(2,2)
    #   linear_size_4 = 8*4*4 = 128, linear_size_5 = 32, output_size = 4
    key = jax.random.PRNGKey(0)
    k_x, k_p = jax.random.split(key)

    N, C, H, W = 2, 4, 16, 16
    x = jax.random.normal(k_x, (N, C, H, W), jnp.float32)

    raw_params = make_params(
        k_p, size_c=C, f1=8, f2=8, f3=8,
        lin4=8 * (H // 4) * (W // 4), lin5=32, out=4,
    )
    prepared = prepare_params(raw_params)

    fwd = jax.jit(functools.partial(landslide_cnn_forward, params=prepared))
    y = fwd(x)
    jax.block_until_ready(y)

    assert y.shape == (N, 4), y.shape
    assert bool(jnp.all(jnp.isfinite(y))), "non-finite output"

    y_ref = landslide_cnn_reference(x, raw_params)
    err = float(jnp.max(jnp.abs(y - y_ref)))
    assert err < 5e-3, f"mismatch vs pure-JAX reference: max|diff|={err}"

    print("KERNEL_OK")
</pallas_src>

<mosaic_0001>
module attributes {stable_mosaic.version = 11 : i64} {
  func.func @kernel(%arg0: i32, %arg1: memref<1x4x256xf32, #tpu.memory_space<vmem>>, %arg2: memref<8x37xf32, #tpu.memory_space<vmem>>, %arg3: memref<36x256xbf16, #tpu.memory_space<vmem>>, %arg4: memref<8x73xf32, #tpu.memory_space<vmem>>, %arg5: memref<72x64xbf16, #tpu.memory_space<vmem>>, %arg6: memref<8x73xf32, #tpu.memory_space<vmem>>, %arg7: memref<72x16xbf16, #tpu.memory_space<vmem>>, %arg8: memref<256x64xbf16, #tpu.memory_space<vmem>>, %arg9: memref<64x16xbf16, #tpu.memory_space<vmem>>, %arg10: memref<24x128xbf16, #tpu.memory_space<vmem>>, %arg11: memref<129x32xf32, #tpu.memory_space<vmem>>, %arg12: memref<33x128xf32, #tpu.memory_space<vmem>>, %arg13: memref<1x1x128xf32, #tpu.memory_space<vmem>>, %arg14: memref<72x256xf32, #tpu.memory_space<vmem>>) attributes {dimension_semantics = [#tpu.dimension_semantics<parallel>], iteration_bounds = array<i64: 2>, scalar_prefetch = 0 : i64, scratch_operands = 1 : i64, tpu.core_type = #tpu.core_type<tc>, window_params = [{transform_indices = @transform_0, window_bounds = array<i64: 1, 4, 256>}, {pipeline_mode = #tpu.pipeline_mode<synchronous>, transform_indices = @transform_1, window_bounds = array<i64: 8, 37>}, {pipeline_mode = #tpu.pipeline_mode<synchronous>, transform_indices = @transform_2, window_bounds = array<i64: 36, 256>}, {pipeline_mode = #tpu.pipeline_mode<synchronous>, transform_indices = @transform_3, window_bounds = array<i64: 8, 73>}, {pipeline_mode = #tpu.pipeline_mode<synchronous>, transform_indices = @transform_4, window_bounds = array<i64: 72, 64>}, {pipeline_mode = #tpu.pipeline_mode<synchronous>, transform_indices = @transform_5, window_bounds = array<i64: 8, 73>}, {pipeline_mode = #tpu.pipeline_mode<synchronous>, transform_indices = @transform_6, window_bounds = array<i64: 72, 16>}, {pipeline_mode = #tpu.pipeline_mode<synchronous>, transform_indices = @transform_7, window_bounds = array<i64: 256, 64>}, {pipeline_mode = #tpu.pipeline_mode<synchronous>, transform_indices = @transform_8, window_bounds = array<i64: 64, 16>}, {pipeline_mode = #tpu.pipeline_mode<synchronous>, transform_indices = @transform_9, window_bounds = array<i64: 24, 128>}, {pipeline_mode = #tpu.pipeline_mode<synchronous>, transform_indices = @transform_10, window_bounds = array<i64: 129, 32>}, {pipeline_mode = #tpu.pipeline_mode<synchronous>, transform_indices = @transform_11, window_bounds = array<i64: 33, 128>}, {transform_indices = @transform_12, window_bounds = array<i64: 1, 1, 128>}]} {
    %c0 = arith.constant 0 : index
    %c0_0 = arith.constant 0 : index
    %c0_1 = arith.constant 0 : index
    %0 = vector.load %arg1[%c0, %c0_0, %c0_1] : memref<1x4x256xf32, #tpu.memory_space<vmem>>, vector<1x4x256xf32>
    %1 = vector.shape_cast %0 : vector<1x4x256xf32> to vector<4x256xf32>
    %2 = vector.extract_strided_slice %1 {offsets = [0, 0], sizes = [4, 239], strides = [1, 1]} : vector<4x256xf32> to vector<4x239xf32>
    %c0_2 = arith.constant 0 : index
    %c17 = arith.constant 17 : index
    %3 = vector.load %arg14[%c0_2, %c17] : memref<72x256xf32, #tpu.memory_space<vmem>>, vector<4x239xf32>
    tpu.vector_store %arg14[%c0_2, %c17], %2 {strides = array<i32>} : memref<72x256xf32, #tpu.memory_space<vmem>>, vector<4x239xf32>,
    %4 = vector.extract_strided_slice %1 {offsets = [0, 0], sizes = [4, 240], strides = [1, 1]} : vector<4x256xf32> to vector<4x240xf32>
    %c4 = arith.constant 4 : index
    %c16 = arith.constant 16 : index
    %5 = vector.load %arg14[%c4, %c16] : memref<72x256xf32, #tpu.memory_space<vmem>>, vector<4x240xf32>
    tpu.vector_store %arg14[%c4, %c16], %4 {strides = array<i32>} : memref<72x256xf32, #tpu.memory_space<vmem>>, vector<4x240xf32>,
    %6 = vector.extract_strided_slice %1 {offsets = [0, 0], sizes = [4, 241], strides = [1, 1]} : vector<4x256xf32> to vector<4x241xf32>
    %c8 = arith.constant 8 : index
    %c15 = arith.constant 15 : index
    %7 = vector.load %arg14[%c8, %c15] : memref<72x256xf32, #tpu.memory_space<vmem>>, vector<4x241xf32>
    tpu.vector_store %arg14[%c8, %c15], %6 {strides = array<i32>} : memref<72x256xf32, #tpu.memory_space<vmem>>, vector<4x241xf32>,
    %8 = vector.extract_strided_slice %1 {offsets = [0, 0], sizes = [4, 255], strides = [1, 1]} : vector<4x256xf32> to vector<4x255xf32>
    %c12 = arith.constant 12 : index
    %c1 = arith.constant 1 : index
    %9 = vector.load %arg14[%c12, %c1] : memref<72x256xf32, #tpu.memory_space<vmem>>, vector<4x255xf32>
    tpu.vector_store %arg14[%c12, %c1], %8 {strides = array<i32>} : memref<72x256xf32, #tpu.memory_space<vmem>>, vector<4x255xf32>,
    %c16_3 = arith.constant 16 : index
    %c0_4 = arith.constant 0 : index
    %10 = vector.load %arg14[%c16_3, %c0_4] : memref<72x256xf32, #tpu.memory_space<vmem>>, vector<4x256xf32>
    tpu.vector_store %arg14[%c16_3, %c0_4], %1 {strides = array<i32>} : memref<72x256xf32, #tpu.memory_space<vmem>>, vector<4x256xf32>,
    %11 = vector.extract_strided_slice %1 {offsets = [0, 1], sizes = [4, 255], strides = [1, 1]} : vector<4x256xf32> to vector<4x255xf32>
    %c20 = arith.constant 20 : index
    %c0_5 = arith.constant 0 : index
    %12 = vector.load %arg14[%c20, %c0_5] : memref<72x256xf32, #tpu.memory_space<vmem>>, vector<4x255xf32>
    tpu.vector_store %arg14[%c20, %c0_5], %11 {strides = array<i32>} : memref<72x256xf32, #tpu.memory_space<vmem>>, vector<4x255xf32>,
    %13 = vector.extract_strided_slice %1 {offsets = [0, 15], sizes = [4, 241], strides = [1, 1]} : vector<4x256xf32> to vector<4x241xf32>
    %c24 = arith.constant 24 : index
    %c0_6 = arith.constant 0 : index
    %14 = vector.load %arg14[%c24, %c0_6] : memref<72x256xf32, #tpu.memory_space<vmem>>, vector<4x241xf32>
    tpu.vector_store %arg14[%c24, %c0_6], %13 {strides = array<i32>} : memref<72x256xf32, #tpu.memory_space<vmem>>, vector<4x241xf32>,
    %15 = vector.extract_strided_slice %1 {offsets = [0, 16], sizes = [4, 240], strides = [1, 1]} : vector<4x256xf32> to vector<4x240xf32>
    %c28 = arith.constant 28 : index
    %c0_7 = arith.constant 0 : index
    %16 = vector.load %arg14[%c28, %c0_7] : memref<72x256xf32, #tpu.memory_space<vmem>>, vector<4x240xf32>
    tpu.vector_store %arg14[%c28, %c0_7], %15 {strides = array<i32>} : memref<72x256xf32, #tpu.memory_space<vmem>>, vector<4x240xf32>,
    %17 = vector.extract_strided_slice %1 {offsets = [0, 17], sizes = [4, 239], strides = [1, 1]} : vector<4x256xf32> to vector<4x239xf32>
    %c32 = arith.constant 32 : index
    %c0_8 = arith.constant 0 : index
    %18 = vector.load %arg14[%c32, %c0_8] : memref<72x256xf32, #tpu.memory_space<vmem>>, vector<4x239xf32>
    tpu.vector_store %arg14[%c32, %c0_8], %17 {strides = array<i32>} : memref<72x256xf32, #tpu.memory_space<vmem>>, vector<4x239xf32>,
    %c0_9 = arith.constant 0 : index
    %c0_10 = arith.constant 0 : index
    %19 = vector.load %arg14[%c0_9, %c0_10] : memref<72x256xf32, #tpu.memory_space<vmem>>, vector<36x256xf32>
    %c0_11 = arith.constant 0 : index
    %c0_12 = arith.constant 0 : index
    %20 = vector.load %arg3[%c0_11, %c0_12] : memref<36x256xbf16, #tpu.memory_space<vmem>>, vector<36x256xbf16>
    %21 = arith.extf %20 : vector<36x256xbf16> to vector<36x256xf32>
    %cst = arith.constant 0.000000e+00 : f32
    %22 = vector.broadcast %cst : f32 to vector<36x256xf32>
    %23 = arith.cmpf one, %21, %22 : vector<36x256xf32>
    %cst_13 = arith.constant 0.000000e+00 : f32
    %24 = vector.broadcast %cst_13 : f32 to vector<36x256xf32>
    %25 = arith.select %23, %19, %24 : vector<36x256xi1>, vector<36x256xf32>
    %c0_14 = arith.constant 0 : index
    %c0_15 = arith.constant 0 : index
    %26 = vector.load %arg2[%c0_14, %c0_15] : memref<8x37xf32, #tpu.memory_space<vmem>>, vector<8x37xf32>
    %27 = vector.extract_strided_slice %26 {offsets = [0, 0], sizes = [8, 36], strides = [1, 1]} : vector<8x37xf32> to vector<8x36xf32>
    %cst_16 = arith.constant dense<0.000000e+00> : vector<8x256xf32>
    %28 = tpu.matmul %27, %25, %cst_16 {dimension_numbers = #tpu.dot_dimension_numbers<[1], [0], [0], [1], [0, 0, 1, 1], [], []>} : vector<8x36xf32>, vector<36x256xf32>, vector<8x256xf32> -> vector<8x256xf32>
    %29 = vector.extract_strided_slice %26 {offsets = [0, 36], sizes = [8, 1], strides = [1, 1]} : vector<8x37xf32> to vector<8x1xf32>
    %30 = vector.broadcast %29 : vector<8x1xf32> to vector<8x256xf32>
    %31 = arith.addf %28, %30 : vector<8x256xf32>
    %32 = math.tanh %31 : vector<8x256xf32>
    %c0_17 = arith.constant 0 : index
    %c0_18 = arith.constant 0 : index
    %33 = vector.load %arg8[%c0_17, %c0_18] : memref<256x64xbf16, #tpu.memory_space<vmem>>, vector<256x64xbf16>
    %34 = arith.extf %33 : vector<256x64xbf16> to vector<256x64xf32>
    %cst_19 = arith.constant dense<0.000000e+00> : vector<8x64xf32>
    %35 = tpu.matmul %32, %34, %cst_19 {dimension_numbers = #tpu.dot_dimension_numbers<[1], [0], [0], [1], [0, 0, 1, 1], [], []>} : vector<8x256xf32>, vector<256x64xf32>, vector<8x64xf32> -> vector<8x64xf32>
    %36 = vector.extract_strided_slice %35 {offsets = [0, 0], sizes = [8, 55], strides = [1, 1]} : vector<8x64xf32> to vector<8x55xf32>
    %c0_20 = arith.constant 0 : index
    %c9 = arith.constant 9 : index
    %37 = vector.load %arg14[%c0_20, %c9] : memref<72x256xf32, #tpu.memory_space<vmem>>, vector<8x55xf32>
    tpu.vector_store %arg14[%c0_20, %c9], %36 {strides = array<i32>} : memref<72x256xf32, #tpu.memory_space<vmem>>, vector<8x55xf32>,
    %38 = vector.extract_strided_slice %35 {offsets = [0, 0], sizes = [8, 56], strides = [1, 1]} : vector<8x64xf32> to vector<8x56xf32>
    %c8_21 = arith.constant 8 : index
    %c8_22 = arith.constant 8 : index
    %39 = vector.load %arg14[%c8_21, %c8_22] : memref<72x256xf32, #tpu.memory_space<vmem>>, vector<8x56xf32>
    tpu.vector_store %arg14[%c8_21, %c8_22], %38 {strides = array<i32>} : memref<72x256xf32, #tpu.memory_space<vmem>>, vector<8x56xf32>,
    %40 = vector.extract_strided_slice %35 {offsets = [0, 0], sizes = [8, 57], strides = [1, 1]} : vector<8x64xf32> to vector<8x57xf32>
    %c16_23 = arith.constant 16 : index
    %c7 = arith.constant 7 : index
    %41 = vector.load %arg14[%c16_23, %c7] : memref<72x256xf32, #tpu.memory_space<vmem>>, vector<8x57xf32>
    tpu.vector_store %arg14[%c16_23, %c7], %40 {strides = array<i32>} : memref<72x256xf32, #tpu.memory_space<vmem>>, vector<8x57xf32>,
    %42 = vector.extract_strided_slice %35 {offsets = [0, 0], sizes = [8, 63], strides = [1, 1]} : vector<8x64xf32> to vector<8x63xf32>
    %c24_24 = arith.constant 24 : index
    %c1_25 = arith.constant 1 : index
    %43 = vector.load %arg14[%c24_24, %c1_25] : memref<72x256xf32, #tpu.memory_space<vmem>>, vector<8x63xf32>
    tpu.vector_store %arg14[%c24_24, %c1_25], %42 {strides = array<i32>} : memref<72x256xf32, #tpu.memory_space<vmem>>, vector<8x63xf32>,
    %c32_26 = arith.constant 32 : index
    %c0_27 = arith.constant 0 : index
    %44 = vector.load %arg14[%c32_26, %c0_27] : memref<72x256xf32, #tpu.memory_space<vmem>>, vector<8x64xf32>
    tpu.vector_store %arg14[%c32_26, %c0_27], %35 {strides = array<i32>} : memref<72x256xf32, #tpu.memory_space<vmem>>, vector<8x64xf32>,
    %45 = vector.extract_strided_slice %35 {offsets = [0, 1], sizes = [8, 63], strides = [1, 1]} : vector<8x64xf32> to vector<8x63xf32>
    %c40 = arith.constant 40 : index
    %c0_28 = arith.constant 0 : index
    %46 = vector.load %arg14[%c40, %c0_28] : memref<72x256xf32, #tpu.memory_space<vmem>>, vector<8x63xf32>
    tpu.vector_store %arg14[%c40, %c0_28], %45 {strides = array<i32>} : memref<72x256xf32, #tpu.memory_space<vmem>>, vector<8x63xf32>,
    %47 = vector.extract_strided_slice %35 {offsets = [0, 7], sizes = [8, 57], strides = [1, 1]} : vector<8x64xf32> to vector<8x57xf32>
    %c48 = arith.constant 48 : index
    %c0_29 = arith.constant 0 : index
    %48 = vector.load %arg14[%c48, %c0_29] : memref<72x256xf32, #tpu.memory_space<vmem>>, vector<8x57xf32>
    tpu.vector_store %arg14[%c48, %c0_29], %47 {strides = array<i32>} : memref<72x256xf32, #tpu.memory_space<vmem>>, vector<8x57xf32>,
    %49 = vector.extract_strided_slice %35 {offsets = [0, 8], sizes = [8, 56], strides = [1, 1]} : vector<8x64xf32> to vector<8x56xf32>
    %c56 = arith.constant 56 : index
    %c0_30 = arith.constant 0 : index
    %50 = vector.load %arg14[%c56, %c0_30] : memref<72x256xf32, #tpu.memory_space<vmem>>, vector<8x56xf32>
    tpu.vector_store %arg14[%c56, %c0_30], %49 {strides = array<i32>} : memref<72x256xf32, #tpu.memory_space<vmem>>, vector<8x56xf32>,
    %51 = vector.extract_strided_slice %35 {offsets = [0, 9], sizes = [8, 55], strides = [1, 1]} : vector<8x64xf32> to vector<8x55xf32>
    %c64 = arith.constant 64 : index
    %c0_31 = arith.constant 0 : index
    %52 = vector.load %arg14[%c64, %c0_31] : memref<72x256xf32, #tpu.memory_space<vmem>>, vector<8x55xf32>
    tpu.vector_store %arg14[%c64, %c0_31], %51 {strides = array<i32>} : memref<72x256xf32, #tpu.memory_space<vmem>>, vector<8x55xf32>,
    %c0_32 = arith.constant 0 : index
    %c0_33 = arith.constant 0 : index
    %53 = vector.load %arg14[%c0_32, %c0_33] : memref<72x256xf32, #tpu.memory_space<vmem>>, vector<72x64xf32>
    %c0_34 = arith.constant 0 : index
    %c0_35 = arith.constant 0 : index
    %54 = vector.load %arg5[%c0_34, %c0_35] : memref<72x64xbf16, #tpu.memory_space<vmem>>, vector<72x64xbf16>
    %55 = arith.extf %54 : vector<72x64xbf16> to vector<72x64xf32>
    %cst_36 = arith.constant 0.000000e+00 : f32
    %56 = vector.broadcast %cst_36 : f32 to vector<72x64xf32>
    %57 = arith.cmpf one, %55, %56 : vector<72x64xf32>
    %cst_37 = arith.constant 0.000000e+00 : f32
    %58 = vector.broadcast %cst_37 : f32 to vector<72x64xf32>
    %59 = arith.select %57, %53, %58 : vector<72x64xi1>, vector<72x64xf32>
    %c0_38 = arith.constant 0 : index
    %c0_39 = arith.constant 0 : index
    %60 = vector.load %arg4[%c0_38, %c0_39] : memref<8x73xf32, #tpu.memory_space<vmem>>, vector<8x73xf32>
    %61 = vector.extract_strided_slice %60 {offsets = [0, 0], sizes = [8, 72], strides = [1, 1]} : vector<8x73xf32> to vector<8x72xf32>
    %cst_40 = arith.constant dense<0.000000e+00> : vector<8x64xf32>
    %62 = tpu.matmul %61, %59, %cst_40 {dimension_numbers = #tpu.dot_dimension_numbers<[1], [0], [0], [1], [0, 0, 1, 1], [], []>} : vector<8x72xf32>, vector<72x64xf32>, vector<8x64xf32> -> vector<8x64xf32>
    %63 = vector.extract_strided_slice %60 {offsets = [0, 72], sizes = [8, 1], strides = [1, 1]} : vector<8x73xf32> to vector<8x1xf32>
    %64 = vector.broadcast %63 : vector<8x1xf32> to vector<8x64xf32>
    %65 = arith.addf %62, %64 : vector<8x64xf32>
    %66 = math.tanh %65 : vector<8x64xf32>
    %c0_41 = arith.constant 0 : index
    %c0_42 = arith.constant 0 : index
    %67 = vector.load %arg9[%c0_41, %c0_42] : memref<64x16xbf16, #tpu.memory_space<vmem>>, vector<64x16xbf16>
    %68 = arith.extf %67 : vector<64x16xbf16> to vector<64x16xf32>
    %cst_43 = arith.constant dense<0.000000e+00> : vector<8x16xf32>
    %69 = tpu.matmul %66, %68, %cst_43 {dimension_numbers = #tpu.dot_dimension_numbers<[1], [0], [0], [1], [0, 0, 1, 1], [], []>} : vector<8x64xf32>, vector<64x16xf32>, vector<8x16xf32> -> vector<8x16xf32>
    %70 = vector.extract_strided_slice %69 {offsets = [0, 0], sizes = [8, 11], strides = [1, 1]} : vector<8x16xf32> to vector<8x11xf32>
    %c0_44 = arith.constant 0 : index
    %c5 = arith.constant 5 : index
    %71 = vector.load %arg14[%c0_44, %c5] : memref<72x256xf32, #tpu.memory_space<vmem>>, vector<8x11xf32>
    tpu.vector_store %arg14[%c0_44, %c5], %70 {strides = array<i32>} : memref<72x256xf32, #tpu.memory_space<vmem>>, vector<8x11xf32>,
    %72 = vector.extract_strided_slice %69 {offsets = [0, 0], sizes = [8, 12], strides = [1, 1]} : vector<8x16xf32> to vector<8x12xf32>
    %c8_45 = arith.constant 8 : index
    %c4_46 = arith.constant 4 : index
    %73 = vector.load %arg14[%c8_45, %c4_46] : memref<72x256xf32, #tpu.memory_space<vmem>>, vector<8x12xf32>
    tpu.vector_store %arg14[%c8_45, %c4_46], %72 {strides = array<i32>} : memref<72x256xf32, #tpu.memory_space<vmem>>, vector<8x12xf32>,
    %74 = vector.extract_strided_slice %69 {offsets = [0, 0], sizes = [8, 13], strides = [1, 1]} : vector<8x16xf32> to vector<8x13xf32>
    %c16_47 = arith.constant 16 : index
    %c3 = arith.constant 3 : index
    %75 = vector.load %arg14[%c16_47, %c3] : memref<72x256xf32, #tpu.memory_space<vmem>>, vector<8x13xf32>
    tpu.vector_store %arg14[%c16_47, %c3], %74 {strides = array<i32>} : memref<72x256xf32, #tpu.memory_space<vmem>>, vector<8x13xf32>,
    %76 = vector.extract_strided_slice %69 {offsets = [0, 0], sizes = [8, 15], strides = [1, 1]} : vector<8x16xf32> to vector<8x15xf32>
    %c24_48 = arith.constant 24 : index
    %c1_49 = arith.constant 1 : index
    %77 = vector.load %arg14[%c24_48, %c1_49] : memref<72x256xf32, #tpu.memory_space<vmem>>, vector<8x15xf32>
    tpu.vector_store %arg14[%c24_48, %c1_49], %76 {strides = array<i32>} : memref<72x256xf32, #tpu.memory_space<vmem>>, vector<8x15xf32>,
    %c32_50 = arith.constant 32 : index
    %c0_51 = arith.constant 0 : index
    %78 = vector.load %arg14[%c32_50, %c0_51] : memref<72x256xf32, #tpu.memory_space<vmem>>, vector<8x16xf32>
    tpu.vector_store %arg14[%c32_50, %c0_51], %69 {strides = array<i32>} : memref<72x256xf32, #tpu.memory_space<vmem>>, vector<8x16xf32>,
    %79 = vector.extract_strided_slice %69 {offsets = [0, 1], sizes = [8, 15], strides = [1, 1]} : vector<8x16xf32> to vector<8x15xf32>
    %c40_52 = arith.constant 40 : index
    %c0_53 = arith.constant 0 : index
    %80 = vector.load %arg14[%c40_52, %c0_53] : memref<72x256xf32, #tpu.memory_space<vmem>>, vector<8x15xf32>
    tpu.vector_store %arg14[%c40_52, %c0_53], %79 {strides = array<i32>} : memref<72x256xf32, #tpu.memory_space<vmem>>, vector<8x15xf32>,
    %81 = vector.extract_strided_slice %69 {offsets = [0, 3], sizes = [8, 13], strides = [1, 1]} : vector<8x16xf32> to vector<8x13xf32>
    %c48_54 = arith.constant 48 : index
    %c0_55 = arith.constant 0 : index
    %82 = vector.load %arg14[%c48_54, %c0_55] : memref<72x256xf32, #tpu.memory_space<vmem>>, vector<8x13xf32>
    tpu.vector_store %arg14[%c48_54, %c0_55], %81 {strides = array<i32>} : memref<72x256xf32, #tpu.memory_space<vmem>>, vector<8x13xf32>,
    %83 = vector.extract_strided_slice %69 {offsets = [0, 4], sizes = [8, 12], strides = [1, 1]} : vector<8x16xf32> to vector<8x12xf32>
    %c56_56 = arith.constant 56 : index
    %c0_57 = arith.constant 0 : index
    %84 = vector.load %arg14[%c56_56, %c0_57] : memref<72x256xf32, #tpu.memory_space<vmem>>, vector<8x12xf32>
    tpu.vector_store %arg14[%c56_56, %c0_57], %83 {strides = array<i32>} : memref<72x256xf32, #tpu.memory_space<vmem>>, vector<8x12xf32>,
    %85 = vector.extract_strided_slice %69 {offsets = [0, 5], sizes = [8, 11], strides = [1, 1]} : vector<8x16xf32> to vector<8x11xf32>
    %c64_58 = arith.constant 64 : index
    %c0_59 = arith.constant 0 : index
    %86 = vector.load %arg14[%c64_58, %c0_59] : memref<72x256xf32, #tpu.memory_space<vmem>>, vector<8x11xf32>
    tpu.vector_store %arg14[%c64_58, %c0_59], %85 {strides = array<i32>} : memref<72x256xf32, #tpu.memory_space<vmem>>, vector<8x11xf32>,
    %c0_60 = arith.constant 0 : index
    %c0_61 = arith.constant 0 : index
    %87 = vector.load %arg14[%c0_60, %c0_61] : memref<72x256xf32, #tpu.memory_space<vmem>>, vector<72x16xf32>
    %c0_62 = arith.constant 0 : index
    %c0_63 = arith.constant 0 : index
    %88 = vector.load %arg7[%c0_62, %c0_63] : memref<72x16xbf16, #tpu.memory_space<vmem>>, vector<72x16xbf16>
    %89 = arith.extf %88 : vector<72x16xbf16> to vector<72x16xf32>
    %cst_64 = arith.constant 0.000000e+00 : f32
    %90 = vector.broadcast %cst_64 : f32 to vector<72x16xf32>
    %91 = arith.cmpf one, %89, %90 : vector<72x16xf32>
    %cst_65 = arith.constant 0.000000e+00 : f32
    %92 = vector.broadcast %cst_65 : f32 to vector<72x16xf32>
    %93 = arith.select %91, %87, %92 : vector<72x16xi1>, vector<72x16xf32>
    %c0_66 = arith.constant 0 : index
    %c0_67 = arith.constant 0 : index
    %94 = vector.load %arg6[%c0_66, %c0_67] : memref<8x73xf32, #tpu.memory_space<vmem>>, vector<8x73xf32>
    %95 = vector.extract_strided_slice %94 {offsets = [0, 0], sizes = [8, 72], strides = [1, 1]} : vector<8x73xf32> to vector<8x72xf32>
    %cst_68 = arith.constant dense<0.000000e+00> : vector<8x16xf32>
    %96 = tpu.matmul %95, %93, %cst_68 {dimension_numbers = #tpu.dot_dimension_numbers<[1], [0], [0], [1], [0, 0, 1, 1], [], []>} : vector<8x72xf32>, vector<72x16xf32>, vector<8x16xf32> -> vector<8x16xf32>
    %97 = vector.extract_strided_slice %94 {offsets = [0, 72], sizes = [8, 1], strides = [1, 1]} : vector<8x73xf32> to vector<8x1xf32>
    %98 = vector.broadcast %97 : vector<8x1xf32> to vector<8x16xf32>
    %99 = arith.addf %96, %98 : vector<8x16xf32>
    %100 = math.tanh %99 : vector<8x16xf32>
    %c0_69 = arith.constant 0 : index
    %c0_70 = arith.constant 0 : index
    %101 = vector.load %arg10[%c0_69, %c0_70] : memref<24x128xbf16, #tpu.memory_space<vmem>>, vector<24x128xbf16>
    %102 = arith.extf %101 : vector<24x128xbf16> to vector<24x128xf32>
    %103 = vector.extract_strided_slice %102 {offsets = [0, 0], sizes = [16, 128], strides = [1, 1]} : vector<24x128xf32> to vector<16x128xf32>
    %104 = vector.extract_strided_slice %102 {offsets = [16, 0], sizes = [8, 128], strides = [1, 1]} : vector<24x128xf32> to vector<8x128xf32>
    %cst_71 = arith.constant dense<0.000000e+00> : vector<8x128xf32>
    %105 = tpu.matmul %100, %103, %cst_71 {dimension_numbers = #tpu.dot_dimension_numbers<[1], [0], [0], [1], [0, 0, 1, 1], [], []>} : vector<8x16xf32>, vector<16x128xf32>, vector<8x128xf32> -> vector<8x128xf32>
    %106 = arith.mulf %104, %105 : vector<8x128xf32>
    %cst_72 = arith.constant dense<0.000000e+00> : vector<128xf32>
    %107 = vector.multi_reduction <add>, %106, %cst_72 [0] : vector<8x128xf32> to vector<128xf32>
    %108 = vector.shape_cast %107 : vector<128xf32> to vector<1x128xf32>
    %c0_73 = arith.constant 0 : index
    %c0_74 = arith.constant 0 : index
    %109 = vector.load %arg11[%c0_73, %c0_74] : memref<129x32xf32, #tpu.memory_space<vmem>>, vector<129x32xf32>
    %110 = vector.extract_strided_slice %109 {offsets = [0, 0], sizes = [128, 32], strides = [1, 1]} : vector<129x32xf32> to vector<128x32xf32>
    %cst_75 = arith.constant dense<0.000000e+00> : vector<1x32xf32>
    %111 = tpu.matmul %108, %110, %cst_75 {dimension_numbers = #tpu.dot_dimension_numbers<[1], [0], [0], [1], [0, 0, 1, 1], [], []>} : vector<1x128xf32>, vector<128x32xf32>, vector<1x32xf32> -> vector<1x32xf32>
    %112 = vector.extract_strided_slice %109 {offsets = [128, 0], sizes = [1, 32], strides = [1, 1]} : vector<129x32xf32> to vector<1x32xf32>
    %113 = arith.addf %111, %112 : vector<1x32xf32>
    %114 = math.tanh %113 : vector<1x32xf32>
    %c0_76 = arith.constant 0 : index
    %c0_77 = arith.constant 0 : index
    %115 = vector.load %arg12[%c0_76, %c0_77] : memref<33x128xf32, #tpu.memory_space<vmem>>, vector<33x128xf32>
    %116 = vector.extract_strided_slice %115 {offsets = [0, 0], sizes = [32, 128], strides = [1, 1]} : vector<33x128xf32> to vector<32x128xf32>
    %cst_78 = arith.constant dense<0.000000e+00> : vector<1x128xf32>
    %117 = tpu.matmul %114, %116, %cst_78 {dimension_numbers = #tpu.dot_dimension_numbers<[1], [0], [0], [1], [0, 0, 1, 1], [], []>} : vector<1x32xf32>, vector<32x128xf32>, vector<1x128xf32> -> vector<1x128xf32>
    %118 = vector.extract_strided_slice %115 {offsets = [32, 0], sizes = [1, 128], strides = [1, 1]} : vector<33x128xf32> to vector<1x128xf32>
    %119 = arith.addf %117, %118 : vector<1x128xf32>
    %120 = math.tanh %119 : vector<1x128xf32>
    %c0_79 = arith.constant 0 : index
    %c0_80 = arith.constant 0 : index
    %c0_81 = arith.constant 0 : index
    %121 = vector.load %arg13[%c0_79, %c0_80, %c0_81] : memref<1x1x128xf32, #tpu.memory_space<vmem>>, vector<1x1x128xf32>
    %122 = vector.shape_cast %121 : vector<1x1x128xf32> to vector<1x128xf32>
    %123 = vector.shape_cast %120 : vector<1x128xf32> to vector<1x1x128xf32>
    tpu.vector_store %arg13[%c0_79, %c0_80, %c0_81], %123 {strides = array<i32>} : memref<1x1x128xf32, #tpu.memory_space<vmem>>, vector<1x1x128xf32>,
    return
  }
  func.func @transform_0(%arg0: i32) -> (i32, i32, i32) {
    %c0_i32 = arith.constant 0 : i32
    %c0_i32_0 = arith.constant 0 : i32
    %c0_i32_1 = arith.constant 0 : i32
    return %arg0, %c0_i32, %c0_i32_0 : i32, i32, i32
  }
  func.func @transform_1(%arg0: i32) -> (i32, i32) {
    %c0_i32 = arith.constant 0 : i32
    %c0_i32_0 = arith.constant 0 : i32
    %c0_i32_1 = arith.constant 0 : i32
    return %c0_i32, %c0_i32_0 : i32, i32
  }
  func.func @transform_2(%arg0: i32) -> (i32, i32) {
    %c0_i32 = arith.constant 0 : i32
    %c0_i32_0 = arith.constant 0 : i32
    %c0_i32_1 = arith.constant 0 : i32
    return %c0_i32, %c0_i32_0 : i32, i32
  }
  func.func @transform_3(%arg0: i32) -> (i32, i32) {
    %c0_i32 = arith.constant 0 : i32
    %c0_i32_0 = arith.constant 0 : i32
    %c0_i32_1 = arith.constant 0 : i32
    return %c0_i32, %c0_i32_0 : i32, i32
  }
  func.func @transform_4(%arg0: i32) -> (i32, i32) {
    %c0_i32 = arith.constant 0 : i32
    %c0_i32_0 = arith.constant 0 : i32
    %c0_i32_1 = arith.constant 0 : i32
    return %c0_i32, %c0_i32_0 : i32, i32
  }
  func.func @transform_5(%arg0: i32) -> (i32, i32) {
    %c0_i32 = arith.constant 0 : i32
    %c0_i32_0 = arith.constant 0 : i32
    %c0_i32_1 = arith.constant 0 : i32
    return %c0_i32, %c0_i32_0 : i32, i32
  }
  func.func @transform_6(%arg0: i32) -> (i32, i32) {
    %c0_i32 = arith.constant 0 : i32
    %c0_i32_0 = arith.constant 0 : i32
    %c0_i32_1 = arith.constant 0 : i32
    return %c0_i32, %c0_i32_0 : i32, i32
  }
  func.func @transform_7(%arg0: i32) -> (i32, i32) {
    %c0_i32 = arith.constant 0 : i32
    %c0_i32_0 = arith.constant 0 : i32
    %c0_i32_1 = arith.constant 0 : i32
    return %c0_i32, %c0_i32_0 : i32, i32
  }
  func.func @transform_8(%arg0: i32) -> (i32, i32) {
    %c0_i32 = arith.constant 0 : i32
    %c0_i32_0 = arith.constant 0 : i32
    %c0_i32_1 = arith.constant 0 : i32
    return %c0_i32, %c0_i32_0 : i32, i32
  }
  func.func @transform_9(%arg0: i32) -> (i32, i32) {
    %c0_i32 = arith.constant 0 : i32
    %c0_i32_0 = arith.constant 0 : i32
    %c0_i32_1 = arith.constant 0 : i32
    return %c0_i32, %c0_i32_0 : i32, i32
  }
  func.func @transform_10(%arg0: i32) -> (i32, i32) {
    %c0_i32 = arith.constant 0 : i32
    %c0_i32_0 = arith.constant 0 : i32
    %c0_i32_1 = arith.constant 0 : i32
    return %c0_i32, %c0_i32_0 : i32, i32
  }
  func.func @transform_11(%arg0: i32) -> (i32, i32) {
    %c0_i32 = arith.constant 0 : i32
    %c0_i32_0 = arith.constant 0 : i32
    %c0_i32_1 = arith.constant 0 : i32
    return %c0_i32, %c0_i32_0 : i32, i32
  }
  func.func @transform_12(%arg0: i32) -> (i32, i32, i32) {
    %c0_i32 = arith.constant 0 : i32
    %c0_i32_0 = arith.constant 0 : i32
    %c0_i32_1 = arith.constant 0 : i32
    return %arg0, %c0_i32, %c0_i32_0 : i32, i32, i32
  }
}

</mosaic_0001>

<llo_original>
// kernel: landslide_cnn_forward.1
$region0: #{landslide_cnn_forward.1}
  #allocation0 [shape = 'u32[]', space=smem, size = 0x4, offset = 0x4, fixed_abs, tag = 'smem constant byte address 0x4 - core index']
  #allocation1 [shape = 'u32[144,128]{1,0:T(1,128)}', space=vmem, size = 0x12000, scoped, tag = 'internal scratch']
  #allocation2 [shape = 'f32[72,256]{1,0:T(8,128)}', space=vmem, size = 0x12000, scoped, tag = 'scratch operand']
  %s0 = inlined_call_operand.vmem [shape: f32[2,4,256], index: 0, kind: input, shape index: {}]
  %s1 = inlined_call_operand.hbm [shape: f32[8,37], index: 1, kind: input, shape index: {}]
  %s2 = inlined_call_operand.hbm [shape: bf16[36,256], index: 2, kind: input, shape index: {}]
  %s3 = inlined_call_operand.hbm [shape: f32[8,73], index: 3, kind: input, shape index: {}]
  %s4 = inlined_call_operand.hbm [shape: bf16[72,64], index: 4, kind: input, shape index: {}]
  %s5 = inlined_call_operand.vmem [shape: f32[8,73], index: 5, kind: input, shape index: {}]
  %s6 = inlined_call_operand.hbm [shape: bf16[72,16], index: 6, kind: input, shape index: {}]
  %s7 = inlined_call_operand.hbm [shape: bf16[256,64], index: 7, kind: input, shape index: {}]
  %s8 = inlined_call_operand.hbm [shape: bf16[64,16], index: 8, kind: input, shape index: {}]
  %s9 = inlined_call_operand.vmem [shape: bf16[24,128], index: 9, kind: input, shape index: {}]
  %s10 = inlined_call_operand.vmem [shape: f32[129,32], index: 10, kind: input, shape index: {}]
  %s11 = inlined_call_operand.hbm [shape: f32[33,128], index: 11, kind: input, shape index: {}]
  %s12 = inlined_call_operand.hbm [shape: f32[2,1,128], index: 12, kind: output, shape index: {}]
  %s13 = sld [smem:[#allocation0]]
  $region113: #{landslide_cnn_forward.1} parent=0
    _
  %s15 = ssub.s32 1, %s13
  %s16 = scalar_select 0, %s15, %s13
  $region1: #{landslide_cnn_forward.1} parent=0
    #allocation3 [shape = 'u8[4096]{0}', space=vmem, size = 0x1000, scoped, tag = 'input window, operand 1, single buffered']
    #allocation4 [shape = 's32[2]{0}', space=sflag, size = 0x8, scoped, tag = 'scoped memory for landslide_cnn_forward.1']
    #allocation5 [shape = 's32[2]{0}', space=sflag, size = 0x8, scoped, tag = 'scoped memory for landslide_cnn_forward.1']
    #allocation6 [shape = 'u8[20480]{0}', space=vmem, size = 0x5000, scoped, tag = 'input window, operand 2, single buffered']
    #allocation7 [shape = 's32[1]{0}', space=sflag, size = 0x4, scoped, tag = 'scoped memory for landslide_cnn_forward.1']
    #allocation8 [shape = 'u8[4096]{0}', space=vmem, size = 0x1000, scoped, tag = 'input window, operand 3, single buffered']
    #allocation9 [shape = 'u8[18432]{0}', space=vmem, size = 0x4800, scoped, tag = 'input window, operand 4, single buffered']
    #allocation10 [shape = 's32[1]{0}', space=sflag, size = 0x4, scoped, tag = 'scoped memory for landslide_cnn_forward.1']
    #allocation11 [shape = 'u8[18432]{0}', space=vmem, size = 0x4800, scoped, tag = 'input window, operand 6, single buffered']
    #allocation12 [shape = 'u8[65536]{0}', space=vmem, size = 0x10000, scoped, tag = 'input window, operand 7, single buffered']
    #allocation13 [shape = 's32[1]{0}', space=sflag, size = 0x4, scoped, tag = 'scoped memory for landslide_cnn_forward.1']
    #allocation14 [shape = 'u8[16384]{0}', space=vmem, size = 0x4000, scoped, tag = 'input window, operand 8, single buffered']
    #allocation15 [shape = 'u8[20480]{0}', space=vmem, size = 0x5000, scoped, tag = 'input window, operand 11, single buffered']
    #allocation16 [shape = 's32[1]{0}', space=sflag, size = 0x4, scoped, tag = 'scoped memory for landslide_cnn_forward.1']
    #allocation17 [shape = 'u8[1024]{0}', space=vmem, size = 0x400, scoped, tag = 'output window, operand 0']
    %17 = vsyncpa [#allocation4], 0
    %18 = vsyncpa [#allocation7], 0
    %19 = vsyncpa [#allocation10], 0
    %20 = vsyncpa [#allocation13], 0
    %21 = vsyncpa [#allocation16], 0
    %22 = vsyncpa [#allocation5], 0
    %s23 = scalar_lea.sflag [#allocation5], 1
    %24 = vsyncpa %s23, 0
    loop: start=0, step=1, limit=4
    $region2: #{landslide_cnn_forward.1} parent=1 // loop_pre_header
      _
    $region3: #{landslide_cnn_forward.1} parent=1 // loop_header
      %s26 = sphi 0, %s30
      %p27 = scmp.ge.s32.totalorder %s26, 4
      %s36 = sphi 0, %s38
      %s39 = sphi 0, %s36
      %s40 = sphi 0, %s39
      %s56 = sphi 0, %s40
      %s60 = sphi 0, %s60
      %s62 = sphi 0, %s60
      %s63 = sphi 0, %s62
      %s77 = sphi 0, %s63
      %s81 = sphi 0, %s81
      %s83 = sphi 0, %s81
      %s84 = sphi 0, %s83
      %s98 = sphi 0, %s84
      %s102 = sphi 0, %s102
      %s104 = sphi 0, %s102
      %s105 = sphi 0, %s104
      %s119 = sphi 0, %s105
      %s123 = sphi 0, %s123
      %s125 = sphi 0, %s123
      %s126 = sphi 0, %s125
      %s140 = sphi 0, %s126
      %s144 = sphi 0, %s144
      %s146 = sphi 0, %s144
      %s147 = sphi 0, %s146
      %s161 = sphi 0, %s147
      %s165 = sphi 0, %s165
      %s167 = sphi 0, %s165
      %s168 = sphi 0, %s167
      %s182 = sphi 0, %s168
      %s186 = sphi 0, %s186
      %s188 = sphi 0, %s186
      %s189 = sphi 0, %s188
      %s203 = sphi 0, %s189
      %s207 = sphi 0, %s207
      %s209 = sphi 0, %s207
      %s210 = sphi 0, %s209
      %s224 = sphi 0, %s210
      %s228 = sphi 0, %s228
      %s230 = sphi 0, %s228
      %s231 = sphi 0, %s230
      %s245 = sphi 0, %s231
      %s249 = sphi 0, %s249
      %s251 = sphi 0, %s249
      %s252 = sphi 0, %s251
      %s266 = sphi 0, %s252
      %s270 = sphi 0, %s270
      %s272 = sphi 0, %s270
      %s273 = sphi 0, %s272
      %s287 = sphi 0, %s273
      %s293 = sphi 0, %s295
      %s296 = sphi 0, %s293
      %s297 = sphi 0, %s296
      %s313 = sphi 0, %s297
    $region4: #{landslide_cnn_forward.1} parent=1 // loop_header_branch
      %29 = sbr.rel (%p27) target = $region8
    $region5: #{landslide_cnn_forward.1} parent=1 // loop_body
      %s31 = ssub.s32 %s26, 1
      %s32 = ssub.s32 %s26, 2
      %s33 = sadd.s32 %s26, 1
      %s34 = ssub.s32 %s26, %s33
      %p35 = scmp.eq.s32.totalorder %s34, 0
      %s37 = sadd.s32 %s36, 1
      %s38 = scalar_select %p35, %s36, %s37
      %p41 = pneg %p35
      %p42 = scmp.eq.s32.totalorder %s26, 1
      %p43 = por %p41, %p42
      %p44 = scmp.ne.s32.totalorder %s36, %s39
      %p45 = scmp.eq.s32.totalorder %s26, 0
      %p46 = por %p44, %p45
      %p47 = scmp.ne.s32.totalorder %s36, %s39
      %p48 = scmp.eq.s32.totalorder %s31, 1
      %p49 = por %p47, %p48
      %p50 = scmp.ne.s32.totalorder %s39, %s40
      %p51 = scmp.eq.s32.totalorder %s31, 0
      %p52 = por %p50, %p51
      %p53 = scmp.ne.s32.totalorder %s39, %s40
      %p54 = scmp.eq.s32.totalorder %s32, 1
      %p55 = por %p53, %p54
      %p57 = scmp.ne.s32.totalorder %s40, %s56
      %p58 = scmp.eq.s32.totalorder %s32, 0
      %p59 = por %p57, %p58
      %s61 = sadd.s32 %s60, 1
      %p64 = scmp.eq.s32.totalorder %s26, 1
      %p65 = scmp.ne.s32.totalorder %s60, %s62
      %p66 = scmp.eq.s32.totalorder %s26, 0
      %p67 = por %p65, %p66
      %p68 = scmp.ne.s32.totalorder %s60, %s62
      %p69 = scmp.eq.s32.totalorder %s31, 1
      %p70 = por %p68, %p69
      %p71 = scmp.ne.s32.totalorder %s62, %s63
      %p72 = scmp.eq.s32.totalorder %s31, 0
      %p73 = por %p71, %p72
      %p74 = scmp.ne.s32.totalorder %s62, %s63
      %p75 = scmp.eq.s32.totalorder %s32, 1
      %p76 = por %p74, %p75
      %p78 = scmp.ne.s32.totalorder %s63, %s77
      %p79 = scmp.eq.s32.totalorder %s32, 0
      %p80 = por %p78, %p79
      %s82 = sadd.s32 %s81, 1
      %p85 = scmp.eq.s32.totalorder %s26, 1
      %p86 = scmp.ne.s32.totalorder %s81, %s83
      %p87 = scmp.eq.s32.totalorder %s26, 0
      %p88 = por %p86, %p87
      %p89 = scmp.ne.s32.totalorder %s81, %s83
      %p90 = scmp.eq.s32.totalorder %s31, 1
      %p91 = por %p89, %p90
      %p92 = scmp.ne.s32.totalorder %s83, %s84
      %p93 = scmp.eq.s32.totalorder %s31, 0
      %p94 = por %p92, %p93
      %p95 = scmp.ne.s32.totalorder %s83, %s84
      %p96 = scmp.eq.s32.totalorder %s32, 1
      %p97 = por %p95, %p96
      %p99 = scmp.ne.s32.totalorder %s84, %s98
      %p100 = scmp.eq.s32.totalorder %s32, 0
      %p101 = por %p99, %p100
      %s103 = sadd.s32 %s102, 1
      %p106 = scmp.eq.s32.totalorder %s26, 1
      %p107 = scmp.ne.s32.totalorder %s102, %s104
      %p108 = scmp.eq.s32.totalorder %s26, 0
      %p109 = por %p107, %p108
      %p110 = scmp.ne.s32.totalorder %s102, %s104
      %p111 = scmp.eq.s32.totalorder %s31, 1
      %p112 = por %p110, %p111
      %p113 = scmp.ne.s32.totalorder %s104, %s105
      %p114 = scmp.eq.s32.totalorder %s31, 0
      %p115 = por %p113, %p114
      %p116 = scmp.ne.s32.totalorder %s104, %s105
      %p117 = scmp.eq.s32.totalorder %s32, 1
      %p118 = por %p116, %p117
      %p120 = scmp.ne.s32.totalorder %s105, %s119
      %p121 = scmp.eq.s32.totalorder %s32, 0
      %p122 = por %p120, %p121
      %s124 = sadd.s32 %s123, 1
      %p127 = scmp.eq.s32.totalorder %s26, 1
      %p128 = scmp.ne.s32.totalorder %s123, %s125
      %p129 = scmp.eq.s32.totalorder %s26, 0
      %p130 = por %p128, %p129
      %p131 = scmp.ne.s32.totalorder %s123, %s125
      %p132 = scmp.eq.s32.totalorder %s31, 1
      %p133 = por %p131, %p132
      %p134 = scmp.ne.s32.totalorder %s125, %s126
      %p135 = scmp.eq.s32.totalorder %s31, 0
      %p136 = por %p134, %p135
      %p137 = scmp.ne.s32.totalorder %s125, %s126
      %p138 = scmp.eq.s32.totalorder %s32, 1
      %p139 = por %p137, %p138
      %p141 = scmp.ne.s32.totalorder %s126, %s140
      %p142 = scmp.eq.s32.totalorder %s32, 0
      %p143 = por %p141, %p142
      %s145 = sadd.s32 %s144, 1
      %p148 = scmp.eq.s32.totalorder %s26, 1
      %p149 = scmp.ne.s32.totalorder %s144, %s146
      %p150 = scmp.eq.s32.totalorder %s26, 0
      %p151 = por %p149, %p150
      %p152 = scmp.ne.s32.totalorder %s144, %s146
      %p153 = scmp.eq.s32.totalorder %s31, 1
      %p154 = por %p152, %p153
      %p155 = scmp.ne.s32.totalorder %s146, %s147
      %p156 = scmp.eq.s32.totalorder %s31, 0
      %p157 = por %p155, %p156
      %p158 = scmp.ne.s32.totalorder %s146, %s147
      %p159 = scmp.eq.s32.totalorder %s32, 1
      %p160 = por %p158, %p159
      %p162 = scmp.ne.s32.totalorder %s147, %s161
      %p163 = scmp.eq.s32.totalorder %s32, 0
      %p164 = por %p162, %p163
      %s166 = sadd.s32 %s165, 1
      %p169 = scmp.eq.s32.totalorder %s26, 1
      %p170 = scmp.ne.s32.totalorder %s165, %s167
      %p171 = scmp.eq.s32.totalorder %s26, 0
      %p172 = por %p170, %p171
      %p173 = scmp.ne.s32.totalorder %s165, %s167
      %p174 = scmp.eq.s32.totalorder %s31, 1
      %p175 = por %p173, %p174
      %p176 = scmp.ne.s32.totalorder %s167, %s168
      %p177 = scmp.eq.s32.totalorder %s31, 0
      %p178 = por %p176, %p177
      %p179 = scmp.ne.s32.totalorder %s167, %s168
      %p180 = scmp.eq.s32.totalorder %s32, 1
      %p181 = por %p179, %p180
      %p183 = scmp.ne.s32.totalorder %s168, %s182
      %p184 = scmp.eq.s32.totalorder %s32, 0
      %p185 = por %p183, %p184
      %s187 = sadd.s32 %s186, 1
      %p190 = scmp.eq.s32.totalorder %s26, 1
      %p191 = scmp.ne.s32.totalorder %s186, %s188
      %p192 = scmp.eq.s32.totalorder %s26, 0
      %p193 = por %p191, %p192
      %p194 = scmp.ne.s32.totalorder %s186, %s188
      %p195 = scmp.eq.s32.totalorder %s31, 1
      %p196 = por %p194, %p195
      %p197 = scmp.ne.s32.totalorder %s188, %s189
      %p198 = scmp.eq.s32.totalorder %s31, 0
      %p199 = por %p197, %p198
      %p200 = scmp.ne.s32.totalorder %s188, %s189
      %p201 = scmp.eq.s32.totalorder %s32, 1
      %p202 = por %p200, %p201
      %p204 = scmp.ne.s32.totalorder %s189, %s203
      %p205 = scmp.eq.s32.totalorder %s32, 0
      %p206 = por %p204, %p205
      %s208 = sadd.s32 %s207, 1
      %p211 = scmp.eq.s32.totalorder %s26, 1
      %p212 = scmp.ne.s32.totalorder %s207, %s209
      %p213 = scmp.eq.s32.totalorder %s26, 0
      %p214 = por %p212, %p213
      %p215 = scmp.ne.s32.totalorder %s207, %s209
      %p216 = scmp.eq.s32.totalorder %s31, 1
      %p217 = por %p215, %p216
      %p218 = scmp.ne.s32.totalorder %s209, %s210
      %p219 = scmp.eq.s32.totalorder %s31, 0
      %p220 = por %p218, %p219
      %p221 = scmp.ne.s32.totalorder %s209, %s210
      %p222 = scmp.eq.s32.totalorder %s32, 1
      %p223 = por %p221, %p222
      %p225 = scmp.ne.s32.totalorder %s210, %s224
      %p226 = scmp.eq.s32.totalorder %s32, 0
      %p227 = por %p225, %p226
      %s229 = sadd.s32 %s228, 1
      %p232 = scmp.eq.s32.totalorder %s26, 1
      %p233 = scmp.ne.s32.totalorder %s228, %s230
      %p234 = scmp.eq.s32.totalorder %s26, 0
      %p235 = por %p233, %p234
      %p236 = scmp.ne.s32.totalorder %s228, %s230
      %p237 = scmp.eq.s32.totalorder %s31, 1
      %p238 = por %p236, %p237
      %p239 = scmp.ne.s32.totalorder %s230, %s231
      %p240 = scmp.eq.s32.totalorder %s31, 0
      %p241 = por %p239, %p240
      %p242 = scmp.ne.s32.totalorder %s230, %s231
      %p243 = scmp.eq.s32.totalorder %s32, 1
      %p244 = por %p242, %p243
      %p246 = scmp.ne.s32.totalorder %s231, %s245
      %p247 = scmp.eq.s32.totalorder %s32, 0
      %p248 = por %p246, %p247
      %s250 = sadd.s32 %s249, 1
      %p253 = scmp.eq.s32.totalorder %s26, 1
      %p254 = scmp.ne.s32.totalorder %s249, %s251
      %p255 = scmp.eq.s32.totalorder %s26, 0
      %p256 = por %p254, %p255
      %p257 = scmp.ne.s32.totalorder %s249, %s251
      %p258 = scmp.eq.s32.totalorder %s31, 1
      %p259 = por %p257, %p258
      %p260 = scmp.ne.s32.totalorder %s251, %s252
      %p261 = scmp.eq.s32.totalorder %s31, 0
      %p262 = por %p260, %p261
      %p263 = scmp.ne.s32.totalorder %s251, %s252
      %p264 = scmp.eq.s32.totalorder %s32, 1
      %p265 = por %p263, %p264
      %p267 = scmp.ne.s32.totalorder %s252, %s266
      %p268 = scmp.eq.s32.totalorder %s32, 0
      %p269 = por %p267, %p268
      %s271 = sadd.s32 %s270, 1
      %p274 = scmp.eq.s32.totalorder %s26, 1
      %p275 = scmp.ne.s32.totalorder %s270, %s272
      %p276 = scmp.eq.s32.totalorder %s26, 0
      %p277 = por %p275, %p276
      %p278 = scmp.ne.s32.totalorder %s270, %s272
      %p279 = scmp.eq.s32.totalorder %s31, 1
      %p280 = por %p278, %p279
      %p281 = scmp.ne.s32.totalorder %s272, %s273
      %p282 = scmp.eq.s32.totalorder %s31, 0
      %p283 = por %p281, %p282
      %p284 = scmp.ne.s32.totalorder %s272, %s273
      %p285 = scmp.eq.s32.totalorder %s32, 1
      %p286 = por %p284, %p285
      %p288 = scmp.ne.s32.totalorder %s273, %s287
      %p289 = scmp.eq.s32.totalorder %s32, 0
      %p290 = por %p288, %p289
      %s291 = ssub.s32 %s26, %s33
      %p292 = scmp.eq.s32.totalorder %s291, 0
      %s294 = sadd.s32 %s293, 1
      %s295 = scalar_select %p292, %s293, %s294
      %p298 = pneg %p292
      %p299 = scmp.eq.s32.totalorder %s26, 1
      %p300 = por %p298, %p299
      %p301 = scmp.ne.s32.totalorder %s293, %s296
      %p302 = scmp.eq.s32.totalorder %s26, 0
      %p303 = por %p301, %p302
      %p304 = scmp.ne.s32.totalorder %s293, %s296
      %p305 = scmp.eq.s32.totalorder %s31, 1
      %p306 = por %p304, %p305
      %p307 = scmp.ne.s32.totalorder %s296, %s297
      %p308 = scmp.eq.s32.totalorder %s31, 0
      %p309 = por %p307, %p308
      %p310 = scmp.ne.s32.totalorder %s296, %s297
      %p311 = scmp.eq.s32.totalorder %s32, 1
      %p312 = por %p310, %p311
      %p314 = scmp.ne.s32.totalorder %s297, %s313
      %p315 = scmp.eq.s32.totalorder %s32, 0
      %p316 = por %p314, %p315
      %p317 = scmp.le.s32.totalorder 1, %s26
      %p318 = scmp.lt.s32.totalorder %s26, 3
      %p319 = pnand %p317, %p318
      %p320 = pneg %p319
      // Predicated region
      $region9: #{landslide_cnn_forward.1} parent=5 // pred_check
        _
      $region10: #{landslide_cnn_forward.1} parent=5 // pred_check_branch
        %322 = sbr.rel (%p319) target = $region12
      $region11: #{landslide_cnn_forward.1} parent=5 // pred_region
        %s323 = ssub.s32 %s26, 1
        // Predicated region
        $region13: #{landslide_cnn_forward.1} parent=11 // pred_check
          %p324 = pneg %p73
        $region14: #{landslide_cnn_forward.1} parent=11 // pred_check_branch
          %326 = sbr.rel (%p324) target = $region16
        $region15: #{landslide_cnn_forward.1} parent=11 // pred_region
          %s328 = ssub.s32 128, 128
          %329 = vsyncadd [#allocation4], %s328
          %s331 = sshll.u32 [#allocation3], 4
          %s332 = int_to_ptr.vmem [resolvable:$true] %s331
          %334 = dma.hbm_to_vmem [thread:$0]  %s1, 128, %s332, [#allocation4]
        $region16: #{landslide_cnn_forward.1} parent=11 // pred_fallthru
          _
        // Predicated region
        $region17: #{landslide_cnn_forward.1} parent=11 // pred_check
          %p335 = pneg %p94
        $region18: #{landslide_cnn_forward.1} parent=11 // pred_check_branch
          %337 = sbr.rel (%p335) target = $region20
        $region19: #{landslide_cnn_forward.1} parent=11 // pred_region
          %s339 = ssub.s32 640, 640
          %340 = vsyncadd [#allocation7], %s339
          %s341 = sshll.u32 [#allocation6], 4
          %s342 = int_to_ptr.vmem [resolvable:$true] %s341
          %347 = dma.hbm_to_vmem [thread:$0]  %s2, 640, %s342, [#allocation7], 128, 128, 8
        $region20: #{landslide_cnn_forward.1} parent=11 // pred_fallthru
          _
        // Predicated region
        $region21: #{landslide_cnn_forward.1} parent=11 // pred_check
          %p348 = pneg %p115
        $region22: #{landslide_cnn_forward.1} parent=11 // pred_check_branch
          %350 = sbr.rel (%p348) target = $region24
        $region23: #{landslide_cnn_forward.1} parent=11 // pred_region
          %s352 = ssub.s32 128, 128
          %353 = vsyncadd [#allocation7], %s352
          %s355 = sshll.u32 [#allocation8], 4
          %s356 = int_to_ptr.vmem [resolvable:$true] %s355
          %358 = dma.hbm_to_vmem [thread:$0]  %s3, 128, %s356, [#allocation7]
        $region24: #{landslide_cnn_forward.1} parent=11 // pred_fallthru
          _
        // Predicated region
        $region25: #{landslide_cnn_forward.1} parent=11 // pred_check
          %p359 = pneg %p136
        $region26: #{landslide_cnn_forward.1} parent=11 // pred_check_branch
          %361 = sbr.rel (%p359) target = $region28
        $region27: #{landslide_cnn_forward.1} parent=11 // pred_region
          %s363 = ssub.s32 576, 576
          %364 = vsyncadd [#allocation10], %s363
          %s365 = sshll.u32 [#allocation9], 4
          %s366 = int_to_ptr.vmem [resolvable:$true] %s365
          %371 = dma.hbm_to_vmem [thread:$0]  %s4, 576, %s366, [#allocation10], 64, 64, 4
        $region28: #{landslide_cnn_forward.1} parent=11 // pred_fallthru
          _
        // Predicated region
        $region29: #{landslide_cnn_forward.1} parent=11 // pred_check
          %p372 = pneg %p157
        $region30: #{landslide_cnn_forward.1} parent=11 // pred_check_branch
          %374 = sbr.rel (%p372) target = $region32
        $region31: #{landslide_cnn_forward.1} parent=11 // pred_region
          _
        $region32: #{landslide_cnn_forward.1} parent=11 // pred_fallthru
          _
        // Predicated region
        $region33: #{landslide_cnn_forward.1} parent=11 // pred_check
          %p375 = pneg %p178
        $region34: #{landslide_cnn_forward.1} parent=11 // pred_check_branch
          %377 = sbr.rel (%p375) target = $region36
        $region35: #{landslide_cnn_forward.1} parent=11 // pred_region
          %s379 = ssub.s32 576, 576
          %380 = vsyncadd [#allocation10], %s379
          %s381 = sshll.u32 [#allocation11], 4
          %s382 = int_to_ptr.vmem [resolvable:$true] %s381
          %387 = dma.hbm_to_vmem [thread:$0]  %s6, 576, %s382, [#allocation10], 64, 64, 4
        $region36: #{landslide_cnn_forward.1} parent=11 // pred_fallthru
          _
        // Predicated region
        $region37: #{landslide_cnn_forward.1} parent=11 // pred_check
          %p388 = pneg %p199
        $region38: #{landslide_cnn_forward.1} parent=11 // pred_check_branch
          %390 = sbr.rel (%p388) target = $region40
        $region39: #{landslide_cnn_forward.1} parent=11 // pred_region
          %s392 = ssub.s32 2048, 2048
          %393 = vsyncadd [#allocation13], %s392
          %s394 = sshll.u32 [#allocation12], 4
          %s395 = int_to_ptr.vmem [resolvable:$true] %s394
          %400 = dma.hbm_to_vmem [thread:$0]  %s7, 2048, %s395, [#allocation13], 64, 64, 4
        $region40: #{landslide_cnn_forward.1} parent=11 // pred_fallthru
          _
        // Predicated region
        $region41: #{landslide_cnn_forward.1} parent=11 // pred_check
          %p401 = pneg %p220
        $region42: #{landslide_cnn_forward.1} parent=11 // pred_check_branch
          %403 = sbr.rel (%p401) target = $region44
        $region43: #{landslide_cnn_forward.1} parent=11 // pred_region
          %s405 = ssub.s32 512, 512
          %406 = vsyncadd [#allocation13], %s405
          %s407 = sshll.u32 [#allocation14], 4
          %s408 = int_to_ptr.vmem [resolvable:$true] %s407
          %413 = dma.hbm_to_vmem [thread:$0]  %s8, 512, %s408, [#allocation13], 64, 64, 4
        $region44: #{landslide_cnn_forward.1} parent=11 // pred_fallthru
          _
        // Predicated region
        $region45: #{landslide_cnn_forward.1} parent=11 // pred_check
          %p414 = pneg %p241
        $region46: #{landslide_cnn_forward.1} parent=11 // pred_check_branch
          %416 = sbr.rel (%p414) target = $region48
        $region47: #{landslide_cnn_forward.1} parent=11 // pred_region
          _
        $region48: #{landslide_cnn_forward.1} parent=11 // pred_fallthru
          _
        // Predicated region
        $region49: #{landslide_cnn_forward.1} parent=11 // pred_check
          %p417 = pneg %p262
        $region50: #{landslide_cnn_forward.1} parent=11 // pred_check_branch
          %419 = sbr.rel (%p417) target = $region52
        $region51: #{landslide_cnn_forward.1} parent=11 // pred_region
          _
        $region52: #{landslide_cnn_forward.1} parent=11 // pred_fallthru
          _
        // Predicated region
        $region53: #{landslide_cnn_forward.1} parent=11 // pred_check
          %p420 = pneg %p283
        $region54: #{landslide_cnn_forward.1} parent=11 // pred_check_branch
          %422 = sbr.rel (%p420) target = $region56
        $region55: #{landslide_cnn_forward.1} parent=11 // pred_region
          %s424 = ssub.s32 640, 640
          %425 = vsyncadd [#allocation16], %s424
          %s426 = sshll.u32 [#allocation15], 4
          %s427 = int_to_ptr.vmem [resolvable:$true] %s426
          %432 = dma.hbm_to_vmem [thread:$0]  %s11, 640, %s427, [#allocation16], 128, 128, 8
        $region56: #{landslide_cnn_forward.1} parent=11 // pred_fallthru
          _
      $region12: #{landslide_cnn_forward.1} parent=5 // pred_fallthru
        _
      %p433 = scmp.lt.s32.totalorder %s26, 2
      // Predicated region
      $region57: #{landslide_cnn_forward.1} parent=5 // pred_check
        %p434 = pneg %p433
      $region58: #{landslide_cnn_forward.1} parent=5 // pred_check_branch
        %436 = sbr.rel (%p434) target = $region60
      $region59: #{landslide_cnn_forward.1} parent=5 // pred_region
        // Predicated region
        $region61: #{landslide_cnn_forward.1} parent=59 // pred_check
          %p437 = pneg %p46
        $region62: #{landslide_cnn_forward.1} parent=59 // pred_check_branch
          %439 = sbr.rel (%p437) target = $region64
        $region63: #{landslide_cnn_forward.1} parent=59 // pred_region
          %p440 = scmp.lt.s32.totalorder %s26, 1
          %s441 = scalar_select %p440, %s26, 1
          %s442 = smul.addr %s441, 2
          %s443 = smul.addr %s442, 4
          %s444 = scalar_lea.vmem %s0, %s443
        $region64: #{landslide_cnn_forward.1} parent=59 // pred_fallthru
          _
      $region60: #{landslide_cnn_forward.1} parent=5 // pred_fallthru
        _
      %p445 = scmp.le.s32.totalorder 1, %s26
      %p446 = scmp.lt.s32.totalorder %s26, 3
      %p447 = pnand %p445, %p446
      %p448 = pneg %p447
      // Predicated region
      $region65: #{landslide_cnn_forward.1} parent=5 // pred_check
        _
      $region66: #{landslide_cnn_forward.1} parent=5 // pred_check_branch
        %450 = sbr.rel (%p447) target = $region68
      $region67: #{landslide_cnn_forward.1} parent=5 // pred_region
        %s451 = ssub.s32 %s26, 1
        // Predicated region
        $region69: #{landslide_cnn_forward.1} parent=67 // pred_check
          %p452 = pneg %p73
        $region70: #{landslide_cnn_forward.1} parent=67 // pred_check_branch
          %454 = sbr.rel (%p452) target = $region72
        $region71: #{landslide_cnn_forward.1} parent=67 // pred_region
          %455 = dma.done [#allocation4], 128
        $region72: #{landslide_cnn_forward.1} parent=67 // pred_fallthru
          _
        // Predicated region
        $region73: #{landslide_cnn_forward.1} parent=67 // pred_check
          %p456 = pneg %p94
        $region74: #{landslide_cnn_forward.1} parent=67 // pred_check_branch
          %458 = sbr.rel (%p456) target = $region76
        $region75: #{landslide_cnn_forward.1} parent=67 // pred_region
          %459 = dma.done [#allocation7], 640
        $region76: #{landslide_cnn_forward.1} parent=67 // pred_fallthru
          _
        // Predicated region
        $region77: #{landslide_cnn_forward.1} parent=67 // pred_check
          %p460 = pneg %p115
        $region78: #{landslide_cnn_forward.1} parent=67 // pred_check_branch
          %462 = sbr.rel (%p460) target = $region80
        $region79: #{landslide_cnn_forward.1} parent=67 // pred_region
          %463 = dma.done [#allocation7], 128
        $region80: #{landslide_cnn_forward.1} parent=67 // pred_fallthru
          _
        // Predicated region
        $region81: #{landslide_cnn_forward.1} parent=67 // pred_check
          %p464 = pneg %p136
        $region82: #{landslide_cnn_forward.1} parent=67 // pred_check_branch
          %466 = sbr.rel (%p464) target = $region84
        $region83: #{landslide_cnn_forward.1} parent=67 // pred_region
          %467 = dma.done [#allocation10], 576
        $region84: #{landslide_cnn_forward.1} parent=67 // pred_fallthru
          _
        // Predicated region
        $region85: #{landslide_cnn_forward.1} parent=67 // pred_check
          %p468 = pneg %p178
        $region86: #{landslide_cnn_forward.1} parent=67 // pred_check_branch
          %470 = sbr.rel (%p468) target = $region88
        $region87: #{landslide_cnn_forward.1} parent=67 // pred_region
          %471 = dma.done [#allocation10], 576
        $region88: #{landslide_cnn_forward.1} parent=67 // pred_fallthru
          _
        // Predicated region
        $region89: #{landslide_cnn_forward.1} parent=67 // pred_check
          %p472 = pneg %p199
        $region90: #{landslide_cnn_forward.1} parent=67 // pred_check_branch
          %474 = sbr.rel (%p472) target = $region92
        $region91: #{landslide_cnn_forward.1} parent=67 // pred_region
          %475 = dma.done [#allocation13], 2048
        $region92: #{landslide_cnn_forward.1} parent=67 // pred_fallthru
          _
        // Predicated region
        $region93: #{landslide_cnn_forward.1} parent=67 // pred_check
          %p476 = pneg %p220
        $region94: #{landslide_cnn_forward.1} parent=67 // pred_check_branch
          %478 = sbr.rel (%p476) target = $region96
        $region95: #{landslide_cnn_forward.1} parent=67 // pred_region
          %479 = dma.done [#allocation13], 512
        $region96: #{landslide_cnn_forward.1} parent=67 // pred_fallthru
          _
        // Predicated region
        $region97: #{landslide_cnn_forward.1} parent=67 // pred_check
          %p480 = pneg %p283
        $region98: #{landslide_cnn_forward.1} parent=67 // pred_check_branch
          %482 = sbr.rel (%p480) target = $region100
        $region99: #{landslide_cnn_forward.1} parent=67 // pred_region
          %483 = dma.done [#allocation16], 640
        $region100: #{landslide_cnn_forward.1} parent=67 // pred_fallthru
          _
        %p484 = scmp.lt.s32.totalorder %s31, 1
        %s485 = scalar_select %p484, %s31, 1
        %s486 = smul.addr %s485, 2
        %s487 = smul.addr %s486, 4
        %s488 = scalar_lea.vmem %s0, %s487
        %p489 = pneg %p52
        %p490 = pneg %p49
        %p491 = pneg %p73
        %p492 = pneg %p70
        %p493 = pneg %p94
        %p494 = pneg %p91
        %p495 = pneg %p115
        %p496 = pneg %p112
        %p497 = pneg %p136
        %p498 = pneg %p133
        %p499 = pneg %p157
        %p500 = pneg %p154
        %p501 = pneg %p178
        %p502 = pneg %p175
        %p503 = pneg %p199
        %p504 = pneg %p196
        %p505 = pneg %p220
        %p506 = pneg %p217
        %p507 = pneg %p241
        %p508 = pneg %p238
        %p509 = pneg %p262
        %p510 = pneg %p259
        %p511 = pneg %p283
        %p512 = pneg %p280
        %p513 = pneg %p309
        %p514 = pneg %p306
        %s515 = sand.u32 %s296, 1
        %s516 = scalar_lea.sflag [#allocation5], %s515
        %s517 = sand.u32 %s296, 1
        %s518 = scalar_lea.vmem [#allocation17], %s517
        %p519 = scmp.lt.s32.totalorder %s31, 1
        %s520 = scalar_select %p519, %s31, 1
        %s521 = smul.addr %s520, 2
        %s522 = smul.addr %s521, 4
        %s523 = scalar_lea.vmem %s0, %s522
        %v524 = vld [vmem:[%s523] sm:$0xff]
        %v526 = vcombine.high %v524, %v524
        %527 = vrot.lane.b32.xlu0 %v524, 17
        %v528 = vpop.permute.xlu0 %527
        %529 = vrot.lane.b32.xlu0 %v526, 17
        %v530 = vpop.permute.xlu0 %529
        %vm531 = vcmask 138240
        %v532 = vsel %vm531, %v528, %v530
        %vm535 = vcmask 1043592
        %536 = vst.msk [vmem:[#allocation2] sm:$0xf] %vm535, %v528
        %537 = vst [vmem:[#allocation2 + $0x8] sm:$0xf] %v532
        %v538 = vcombine.low %v524, %v524
        %539 = vrot.lane.b32.xlu0 %v538, 16
        %v540 = vpop.permute.xlu0 %539
        %541 = vrot.lane.b32.xlu0 %v524, 16
        %v542 = vpop.permute.xlu0 %541
        %vm543 = vcmask 130048
        %v544 = vsel %vm543, %v540, %v542
        %vm547 = vcmask 1047684
        %548 = vst.msk [vmem:[#allocation2] sm:$0xf0] %vm547, %v540
        %549 = vst [vmem:[#allocation2 + $0x8] sm:$0xf0] %v544
        %550 = vrot.lane.b32.xlu0 %v524, 15
        %v551 = vpop.permute.xlu0 %550
        %552 = vrot.lane.b32.xlu0 %v526, 15
        %v553 = vpop.permute.xlu0 %552
        %vm554 = vcmask 121856
        %v555 = vsel %vm554, %v551, %v553
        %vm558 = vcmask 1043576
        %559 = vst.msk [vmem:[#allocation2 + $0x10] sm:$0xf] %vm558, %v551
        %560 = vst [vmem:[#allocation2 + $0x18] sm:$0xf] %v555
        %561 = vrot.lane.b32.xlu0 %v538, 1
        %v562 = vpop.permute.xlu0 %561
        %563 = vrot.lane.b32.xlu0 %v524, 1
        %v564 = vpop.permute.xlu0 %563
        %vm565 = vcmask 7168
        %v566 = vsel %vm565, %v562, %v564
        %vm569 = vcmask 1047564
        %570 = vst.msk [vmem:[#allocation2 + $0x10] sm:$0xf0] %vm569, %v562
        %571 = vst [vmem:[#allocation2 + $0x18] sm:$0xf0] %v566
        %573 = vst [vmem:[#allocation2 + $0x20] sm:$0xf] %v524
        %574 = vst [vmem:[#allocation2 + $0x28] sm:$0xf] %v526
        %575 = vrot.lane.b32.xlu0 %v538, 127
        %v576 = vpop.permute.xlu0 %575
        %577 = vrot.lane.b32.xlu0 %v524, 127
        %v578 = vpop.permute.xlu0 %577
        %vm579 = vcmask 1039360
        %v580 = vsel %vm579, %v576, %v578
        %583 = vst [vmem:[#allocation2 + $0x20] sm:$0xf0] %v580
        %vm584 = vcmask 1039364
        %585 = vst.msk [vmem:[#allocation2 + $0x28] sm:$0xf0] %vm584, %v578
        %586 = vrot.lane.b32.xlu0 %v524, 113
        %v587 = vpop.permute.xlu0 %586
        %588 = vrot.lane.b32.xlu0 %v526, 113
        %v589 = vpop.permute.xlu0 %588
        %vm590 = vcmask 924672
        %v591 = vsel %vm590, %v587, %v589
        %594 = vst [vmem:[#allocation2 + $0x30] sm:$0xf] %v591
        %vm595 = vcmask 920576
        %596 = vst.msk [vmem:[#allocation2 + $0x38] sm:$0xf] %vm595, %v589
        %597 = vrot.lane.b32.xlu0 %v538, 112
        %v598 = vpop.permute.xlu0 %597
        %599 = vrot.lane.b32.xlu0 %v524, 112
        %v600 = vpop.permute.xlu0 %599
        %vm601 = vcmask 916480
        %v602 = vsel %vm601, %v598, %v600
        %605 = vst [vmem:[#allocation2 + $0x30] sm:$0xf0] %v602
        %vm606 = vcmask 916484
        %607 = vst.msk [vmem:[#allocation2 + $0x38] sm:$0xf0] %vm606, %v600
        %608 = vrot.lane.b32.xlu0 %v524, 111
        %v609 = vpop.permute.xlu0 %608
        %610 = vrot.lane.b32.xlu0 %v526, 111
        %v611 = vpop.permute.xlu0 %610
        %vm612 = vcmask 908288
        %v613 = vsel %vm612, %v609, %v611
        %616 = vst [vmem:[#allocation2 + $0x40] sm:$0xf] %v613
        %vm617 = vcmask 904192
        %618 = vst.msk [vmem:[#allocation2 + $0x48] sm:$0xf] %vm617, %v611
        %v619 = vld [vmem:[#allocation2] sm:$0xff]
        %v620 = vld [vmem:[#allocation2 + $0x8] sm:$0xff]
        %v621 = vld [vmem:[#allocation2 + $0x10] sm:$0xff]
        %v622 = vld [vmem:[#allocation2 + $0x18] sm:$0xff]
        %v623 = vld [vmem:[#allocation2 + $0x20] sm:$0xff]
        %v624 = vld [vmem:[#allocation2 + $0x28] sm:$0xff]
        %v625 = vld [vmem:[#allocation2 + $0x30] sm:$0xff]
        %v626 = vld [vmem:[#allocation2 + $0x38] sm:$0xff]
        %v627 = vld [vmem:[#allocation2 + $0x40] sm:$0xf]
        %v628 = vld [vmem:[#allocation2 + $0x48] sm:$0xf]
        %v629 = vld [vmem:[#allocation6] sm:$0xff]
        %v630 = vld [vmem:[#allocation6 + $0x8] sm:$0xff]
        %v631 = vld [vmem:[#allocation6 + $0x10] sm:$0xff]
        %v632 = vld [vmem:[#allocation6 + $0x18] sm:$0xff]
        %v633 = vld [vmem:[#allocation6 + $0x20] sm:$0x33]
        %v634 = vunpack.c.l.bf16 %v629
        %v635 = vunpack.c.h.bf16 %v629
        %v636 = vunpack.c.l.bf16 %v630
        %v637 = vunpack.c.h.bf16 %v630
        %v638 = vunpack.c.l.bf16 %v631
        %v639 = vunpack.c.h.bf16 %v631
        %v640 = vunpack.c.l.bf16 %v632
        %v641 = vunpack.c.h.bf16 %v632
        %v642 = vunpack.c.l.bf16 %v633
        %v643 = vunpack.c.h.bf16 %v633
        %vm644 = vcmp.ne.f32.partialorder %v634, 0.0
        %vm645 = vcmp.ne.f32.partialorder %v635, 0.0
        %vm646 = vcmp.ne.f32.partialorder %v636, 0.0
        %vm647 = vcmp.ne.f32.partialorder %v637, 0.0
        %vm648 = vcmp.ne.f32.partialorder %v638, 0.0
        %vm649 = vcmp.ne.f32.partialorder %v639, 0.0
        %vm650 = vcmp.ne.f32.partialorder %v640, 0.0
        %vm651 = vcmp.ne.f32.partialorder %v641, 0.0
        %vm652 = vcmp.ne.f32.partialorder %v642, 0.0
        %vm653 = vcmp.ne.f32.partialorder %v643, 0.0
        %v654 = vsel %vm644, %v619, 0.0
        %v655 = vsel %vm645, %v620, 0.0
        %v656 = vsel %vm646, %v621, 0.0
        %v657 = vsel %vm647, %v622, 0.0
        %v658 = vsel %vm648, %v623, 0.0
        %v659 = vsel %vm649, %v624, 0.0
        %v660 = vsel %vm650, %v625, 0.0
        %v661 = vsel %vm651, %v626, 0.0
        %v662 = vsel %vm652, %v627, 0.0
        %v663 = vsel %vm653, %v628, 0.0
        %v664 = vld [vmem:[#allocation3] sm:$0xff]
        %666 = vset.pattern.permute.xlu0 36
        %667 = vperm.xlu0 %666, %v664
        %v668 = vpop.permute.xlu0 %667
        %vm670 = vcmask 293888
        %v671 = vsel %vm670, %v664, 0
        %vm673 = vcmask 1043456
        %v675 = vsel %vm673, %v662, 0
        %v678 = vsel %vm673, %v663, 0
        %680 = vmatprep.subr.mxu0 0.0
        %681 = vmatpush1.msra.mxu0 0.0
        %682 = vmatprep.subr.mxu0 0.0
        %683 = vmatpush1.msra.mxu0 0.0
        %684 = vmatprep.subr.mxu0 0.0
        %685 = vmatpush1.msra.mxu0 0.0
        %686 = vmatprep.subr.mxu0 0.0
        %687 = vmatpush1.msra.mxu0 0.0
        %688 = vmatprep.subr.mxu0 0.0
        %689 = vmatpush1.msra.mxu0 0.0
        %690 = vmatprep.subr.mxu0 0.0
        %691 = vmatpush1.msra.mxu0 0.0
        %692 = vmatprep.subr.mxu0 0.0
        %693 = vmatpush1.msra.mxu0 0.0
        %694 = vmatprep.subr.mxu0 0.0
        %695 = vmatpush1.msra.mxu0 0.0
        %696 = vmatprep.subr.mxu0 0.0
        %697 = vmatpush1.msra.mxu0 0.0
        %698 = vmatprep.subr.mxu0 0.0
        %699 = vmatpush1.msra.mxu0 0.0
        %700 = vmatprep.subr.mxu0 0.0
        %701 = vmatpush1.msra.mxu0 0.0
        %702 = vmatprep.subr.mxu0 %v678
        %703 = vmatpush1.msra.mxu0 %v675
        %704 = vmatprep.subr.mxu0 %v661
        %705 = vmatpush1.msra.mxu0 %v660
        %706 = vmatprep.subr.mxu0 %v659
        %707 = vmatpush1.msra.mxu0 %v658
        %708 = vmatprep.subr.mxu0 %v657
        %709 = vmatpush1.msra.mxu0 %v656
        %710 = vmatprep.subr.mxu0 %v655
        %711 = vmatpush1.msra.mxu0 %v654
        %712 = vmatprep.subr.mxu0 0.0
        %713 = vmatpush2.msra.mxu0 0.0
        %714 = vmatprep.subr.mxu0 0.0
        %715 = vmatpush2.msra.mxu0 0.0
        %716 = vmatprep.subr.mxu0 0.0
        %717 = vmatpush2.msra.mxu0 0.0
        %718 = vmatprep.subr.mxu0 0.0
        %719 = vmatpush2.msra.mxu0 0.0
        %720 = vmatprep.subr.mxu0 0.0
        %721 = vmatpush2.msra.mxu0 0.0
        %722 = vmatprep.subr.mxu0 0.0
        %723 = vmatpush2.msra.mxu0 0.0
        %724 = vmatprep.subr.mxu0 0.0
        %725 = vmatpush2.msra.mxu0 0.0
        %726 = vmatprep.subr.mxu0 0.0
        %727 = vmatpush2.msra.mxu0 0.0
        %728 = vmatprep.subr.mxu0 0.0
        %729 = vmatpush2.msra.mxu0 0.0
        %730 = vmatprep.subr.mxu0 0.0
        %731 = vmatpush2.msra.mxu0 0.0
        %732 = vmatprep.subr.mxu0 0.0
        %733 = vmatpush2.msra.mxu0 0.0
        %734 = vmatprep.subr.mxu0 0.0
        %735 = vmatpush2.msra.mxu0 0.0
        %736 = vmatprep.subr.mxu0 0.0
        %737 = vmatpush2.msra.mxu0 0.0
        %738 = vmatprep.subr.mxu0 0.0
        %739 = vmatpush2.msra.mxu0 0.0
        %740 = vmatprep.subr.mxu0 0.0
        %741 = vmatpush2.msra.mxu0 0.0
        %742 = vmatprep.subr.mxu0 0.0
        %743 = vmatpush2.msra.mxu0 0.0
        %744 = vmatprep.mubr.f32.mxu0 0.0
        %745 = vmatmul.mubr.f32.gmra.mxu0 %v671
        %v746 = vpop.f32.mrf.mxu0
        %v747 = vadd.f32 %v668, %v746
        %v748 = vpop.f32.mrf.mxu0
        %v749 = vadd.f32 %v668, %v748
        %750 = vdwg.mxu0
        %v751 = vtanh.pop %v747
        %v752 = vtanh.pop %v749
        %v753 = vld [vmem:[#allocation12] sm:$0xf]
        %v754 = vld [vmem:[#allocation12 + $0x4] sm:$0xf]
        %v755 = vld [vmem:[#allocation12 + $0x8] sm:$0xf]
        %v756 = vld [vmem:[#allocation12 + $0xc] sm:$0xf]
        %v757 = vld [vmem:[#allocation12 + $0x10] sm:$0xf]
        %v758 = vld [vmem:[#allocation12 + $0x14] sm:$0xf]
        %v759 = vld [vmem:[#allocation12 + $0x18] sm:$0xf]
        %v760 = vld [vmem:[#allocation12 + $0x1c] sm:$0xf]
        %v761 = vld [vmem:[#allocation12 + $0x20] sm:$0xf]
        %v762 = vld [vmem:[#allocation12 + $0x24] sm:$0xf]
        %v763 = vld [vmem:[#allocation12 + $0x28] sm:$0xf]
        %v764 = vld [vmem:[#allocation12 + $0x2c] sm:$0xf]
        %v765 = vld [vmem:[#allocation12 + $0x30] sm:$0xf]
        %v766 = vld [vmem:[#allocation12 + $0x34] sm:$0xf]
        %v767 = vld [vmem:[#allocation12 + $0x38] sm:$0xf]
        %v768 = vld [vmem:[#allocation12 + $0x3c] sm:$0xf]
        %v769 = vld [vmem:[#allocation12 + $0x40] sm:$0xf]
        %v770 = vld [vmem:[#allocation12 + $0x44] sm:$0xf]
        %v771 = vld [vmem:[#allocation12 + $0x48] sm:$0xf]
        %v772 = vld [vmem:[#allocation12 + $0x4c] sm:$0xf]
        %v773 = vld [vmem:[#allocation12 + $0x50] sm:$0xf]
        %v774 = vld [vmem:[#allocation12 + $0x54] sm:$0xf]
        %v775 = vld [vmem:[#allocation12 + $0x58] sm:$0xf]
        %v776 = vld [vmem:[#allocation12 + $0x5c] sm:$0xf]
        %v777 = vld [vmem:[#allocation12 + $0x60] sm:$0xf]
        %v778 = vld [vmem:[#allocation12 + $0x64] sm:$0xf]
        %v779 = vld [vmem:[#allocation12 + $0x68] sm:$0xf]
        %v780 = vld [vmem:[#allocation12 + $0x6c] sm:$0xf]
        %v781 = vld [vmem:[#allocation12 + $0x70] sm:$0xf]
        %v782 = vld [vmem:[#allocation12 + $0x74] sm:$0xf]
        %v783 = vld [vmem:[#allocation12 + $0x78] sm:$0xf]
        %v784 = vld [vmem:[#allocation12 + $0x7c] sm:$0xf]
        %v785 = vunpack.c.l.bf16 %v753
        %v786 = vunpack.c.l.bf16 %v754
        %v787 = vunpack.c.l.bf16 %v755
        %v788 = vunpack.c.l.bf16 %v756
        %v789 = vunpack.c.l.bf16 %v757
        %v790 = vunpack.c.l.bf16 %v758
        %v791 = vunpack.c.l.bf16 %v759
        %v792 = vunpack.c.l.bf16 %v760
        %v793 = vunpack.c.l.bf16 %v761
        %v794 = vunpack.c.l.bf16 %v762
        %v795 = vunpack.c.l.bf16 %v763
        %v796 = vunpack.c.l.bf16 %v764
        %v797 = vunpack.c.l.bf16 %v765
        %v798 = vunpack.c.l.bf16 %v766
        %v799 = vunpack.c.l.bf16 %v767
        %v800 = vunpack.c.l.bf16 %v768
        %v801 = vunpack.c.l.bf16 %v769
        %v802 = vunpack.c.l.bf16 %v770
        %v803 = vunpack.c.l.bf16 %v771
        %v804 = vunpack.c.l.bf16 %v772
        %v805 = vunpack.c.l.bf16 %v773
        %v806 = vunpack.c.l.bf16 %v774
        %v807 = vunpack.c.l.bf16 %v775
        %v808 = vunpack.c.l.bf16 %v776
        %v809 = vunpack.c.l.bf16 %v777
        %v810 = vunpack.c.l.bf16 %v778
        %v811 = vunpack.c.l.bf16 %v779
        %v812 = vunpack.c.l.bf16 %v780
        %v813 = vunpack.c.l.bf16 %v781
        %v814 = vunpack.c.l.bf16 %v782
        %v815 = vunpack.c.l.bf16 %v783
        %v816 = vunpack.c.l.bf16 %v784
        %817 = vmatprep.subr.mxu0 0.0
        %818 = vmatpush1.msra.mxu0 %v800
        %819 = vmatprep.subr.mxu0 0.0
        %820 = vmatpush1.msra.mxu0 %v799
        %821 = vmatprep.subr.mxu0 0.0
        %822 = vmatpush1.msra.mxu0 %v798
        %823 = vmatprep.subr.mxu0 0.0
        %824 = vmatpush1.msra.mxu0 %v797
        %825 = vmatprep.subr.mxu0 0.0
        %826 = vmatpush1.msra.mxu0 %v796
        %827 = vmatprep.subr.mxu0 0.0
        %828 = vmatpush1.msra.mxu0 %v795
        %829 = vmatprep.subr.mxu0 0.0
        %830 = vmatpush1.msra.mxu0 %v794
        %831 = vmatprep.subr.mxu0 0.0
        %832 = vmatpush1.msra.mxu0 %v793
        %833 = vmatprep.subr.mxu0 0.0
        %834 = vmatpush1.msra.mxu0 %v792
        %835 = vmatprep.subr.mxu0 0.0
        %836 = vmatpush1.msra.mxu0 %v791
        %837 = vmatprep.subr.mxu0 0.0
        %838 = vmatpush1.msra.mxu0 %v790
        %839 = vmatprep.subr.mxu0 0.0
        %840 = vmatpush1.msra.mxu0 %v789
        %841 = vmatprep.subr.mxu0 0.0
        %842 = vmatpush1.msra.mxu0 %v788
        %843 = vmatprep.subr.mxu0 0.0
        %844 = vmatpush1.msra.mxu0 %v787
        %845 = vmatprep.subr.mxu0 0.0
        %846 = vmatpush1.msra.mxu0 %v786
        %847 = vmatprep.subr.mxu0 0.0
        %848 = vmatpush1.msra.mxu0 %v785
        %849 = vmatprep.subr.mxu0 0.0
        %850 = vmatpush2.msra.mxu0 %v816
        %851 = vmatprep.subr.mxu0 0.0
        %852 = vmatpush2.msra.mxu0 %v815
        %853 = vmatprep.subr.mxu0 0.0
        %854 = vmatpush2.msra.mxu0 %v814
        %855 = vmatprep.subr.mxu0 0.0
        %856 = vmatpush2.msra.mxu0 %v813
        %857 = vmatprep.subr.mxu0 0.0
        %858 = vmatpush2.msra.mxu0 %v812
        %859 = vmatprep.subr.mxu0 0.0
        %860 = vmatpush2.msra.mxu0 %v811
        %861 = vmatprep.subr.mxu0 0.0
        %862 = vmatpush2.msra.mxu0 %v810
        %863 = vmatprep.subr.mxu0 0.0
        %864 = vmatpush2.msra.mxu0 %v809
        %865 = vmatprep.subr.mxu0 0.0
        %866 = vmatpush2.msra.mxu0 %v808
        %867 = vmatprep.subr.mxu0 0.0
        %868 = vmatpush2.msra.mxu0 %v807
        %869 = vmatprep.subr.mxu0 0.0
        %870 = vmatpush2.msra.mxu0 %v806
        %871 = vmatprep.subr.mxu0 0.0
        %872 = vmatpush2.msra.mxu0 %v805
        %873 = vmatprep.subr.mxu0 0.0
        %874 = vmatpush2.msra.mxu0 %v804
        %875 = vmatprep.subr.mxu0 0.0
        %876 = vmatpush2.msra.mxu0 %v803
        %877 = vmatprep.subr.mxu0 0.0
        %878 = vmatpush2.msra.mxu0 %v802
        %879 = vmatprep.subr.mxu0 0.0
        %880 = vmatpush2.msra.mxu0 %v801
        %881 = vmatprep.mubr.f32.mxu0 %v752
        %882 = vmatmul.mubr.f32.gmra.mxu0 %v751
        %v883 = vpop.f32.mrf.mxu0
        %v884 = vadd.f32 0.0, %v883
        %v885 = vpop.f32.mrf.mxu0
        %886 = vdwg.mxu0
        %888 = vrot.lane.b32.xlu0 %v884, 9
        %v889 = vpop.permute.xlu0 %888
        %vm891 = vcmask 523336
        %892 = vst.msk [vmem:[#allocation2] sm:$0xff] %vm891, %v889
        %893 = vrot.lane.b32.xlu0 %v884, 8
        %v894 = vpop.permute.xlu0 %893
        %vm896 = vcmask 523328
        %897 = vst.msk [vmem:[#allocation2 + $0x10] sm:$0xff] %vm896, %v894
        %898 = vrot.lane.b32.xlu0 %v884, 7
        %v899 = vpop.permute.xlu0 %898
        %vm901 = vcmask 523320
        %902 = vst.msk [vmem:[#allocation2 + $0x20] sm:$0xff] %vm901, %v899
        %903 = vrot.lane.b32.xlu0 %v884, 1
        %v904 = vpop.permute.xlu0 %903
        %vm906 = vcmask 523272
        %907 = vst.msk [vmem:[#allocation2 + $0x30] sm:$0xff] %vm906, %v904
        %vm908 = vcmask 523264
        %909 = vst.msk [vmem:[#allocation2 + $0x40] sm:$0xff] %vm908, %v884
        %910 = vrot.lane.b32.xlu0 %v884, 127
        %v911 = vpop.permute.xlu0 %910
        %vm913 = vcmask 515072
        %914 = vst.msk [vmem:[#allocation2 + $0x50] sm:$0xff] %vm913, %v911
        %915 = vrot.lane.b32.xlu0 %v884, 121
        %v916 = vpop.permute.xlu0 %915
        %vm918 = vcmask 465920
        %919 = vst.msk [vmem:[#allocation2 + $0x60] sm:$0xff] %vm918, %v916
        %920 = vrot.lane.b32.xlu0 %v884, 120
        %v921 = vpop.permute.xlu0 %920
        %vm923 = vcmask 457728
        %924 = vst.msk [vmem:[#allocation2 + $0x70] sm:$0xff] %vm923, %v921
        %925 = vrot.lane.b32.xlu0 %v884, 119
        %v926 = vpop.permute.xlu0 %925
        %vm928 = vcmask 449536
        %929 = vst.msk [vmem:[#allocation2 + $0x80] sm:$0xff] %vm928, %v926
        %v930 = vld [vmem:[#allocation2] sm:$0xff]
        %v931 = vld [vmem:[#allocation2 + $0x10] sm:$0xff]
        %v932 = vld [vmem:[#allocation2 + $0x20] sm:$0xff]
        %v933 = vld [vmem:[#allocation2 + $0x30] sm:$0xff]
        %v934 = vld [vmem:[#allocation2 + $0x40] sm:$0xff]
        %v935 = vld [vmem:[#allocation2 + $0x50] sm:$0xff]
        %v936 = vld [vmem:[#allocation2 + $0x60] sm:$0xff]
        %v937 = vld [vmem:[#allocation2 + $0x70] sm:$0xff]
        %v938 = vld [vmem:[#allocation2 + $0x80] sm:$0xff]
        %v939 = vld [vmem:[#allocation9] sm:$0xf]
        %v940 = vld [vmem:[#allocation9 + $0x4] sm:$0xf]
        %v941 = vld [vmem:[#allocation9 + $0x8] sm:$0xf]
        %v942 = vld [vmem:[#allocation9 + $0xc] sm:$0xf]
        %v943 = vld [vmem:[#allocation9 + $0x10] sm:$0xf]
        %v944 = vld [vmem:[#allocation9 + $0x14] sm:$0xf]
        %v945 = vld [vmem:[#allocation9 + $0x18] sm:$0xf]
        %v946 = vld [vmem:[#allocation9 + $0x1c] sm:$0xf]
        %v947 = vld [vmem:[#allocation9 + $0x20] sm:$0xf]
        %v948 = vunpack.c.l.bf16 %v939
        %v949 = vunpack.c.l.bf16 %v940
        %v950 = vunpack.c.l.bf16 %v941
        %v951 = vunpack.c.l.bf16 %v942
        %v952 = vunpack.c.l.bf16 %v943
        %v953 = vunpack.c.l.bf16 %v944
        %v954 = vunpack.c.l.bf16 %v945
        %v955 = vunpack.c.l.bf16 %v946
        %v956 = vunpack.c.l.bf16 %v947
        %vm957 = vcmp.ne.f32.partialorder %v948, 0.0
        %vm958 = vcmp.ne.f32.partialorder %v949, 0.0
        %vm959 = vcmp.ne.f32.partialorder %v950, 0.0
        %vm960 = vcmp.ne.f32.partialorder %v951, 0.0
        %vm961 = vcmp.ne.f32.partialorder %v952, 0.0
        %vm962 = vcmp.ne.f32.partialorder %v953, 0.0
        %vm963 = vcmp.ne.f32.partialorder %v954, 0.0
        %vm964 = vcmp.ne.f32.partialorder %v955, 0.0
        %vm965 = vcmp.ne.f32.partialorder %v956, 0.0
        %v966 = vsel %vm957, %v930, 0.0
        %v967 = vsel %vm958, %v931, 0.0
        %v968 = vsel %vm959, %v932, 0.0
        %v969 = vsel %vm960, %v933, 0.0
        %v970 = vsel %vm961, %v934, 0.0
        %v971 = vsel %vm962, %v935, 0.0
        %v972 = vsel %vm963, %v936, 0.0
        %v973 = vsel %vm964, %v937, 0.0
        %v974 = vsel %vm965, %v938, 0.0
        %v975 = vld [vmem:[#allocation8] sm:$0xff]
        %977 = vset.pattern.permute.xlu0 72
        %978 = vperm.xlu0 %977, %v975
        %v979 = vpop.permute.xlu0 %978
        %vm981 = vcmask 588800
        %v982 = vsel %vm981, %v975, 0
        %984 = vmatprep.subr.mxu0 0.0
        %985 = vmatpush1.msra.mxu0 0.0
        %986 = vmatprep.subr.mxu0 0.0
        %987 = vmatpush1.msra.mxu0 0.0
        %988 = vmatprep.subr.mxu0 0.0
        %989 = vmatpush1.msra.mxu0 0.0
        %990 = vmatprep.subr.mxu0 0.0
        %991 = vmatpush1.msra.mxu0 0.0
        %992 = vmatprep.subr.mxu0 0.0
        %993 = vmatpush1.msra.mxu0 0.0
        %994 = vmatprep.subr.mxu0 0.0
        %995 = vmatpush1.msra.mxu0 0.0
        %996 = vmatprep.subr.mxu0 0.0
        %997 = vmatpush1.msra.mxu0 0.0
        %998 = vmatprep.subr.mxu0 0.0
        %999 = vmatpush1.msra.mxu0 %v974
        %1000 = vmatprep.subr.mxu0 0.0
        %1001 = vmatpush1.msra.mxu0 %v973
        %1002 = vmatprep.subr.mxu0 0.0
        %1003 = vmatpush1.msra.mxu0 %v972
        %1004 = vmatprep.subr.mxu0 0.0
        %1005 = vmatpush1.msra.mxu0 %v971
        %1006 = vmatprep.subr.mxu0 0.0
        %1007 = vmatpush1.msra.mxu0 %v970
        %1008 = vmatprep.subr.mxu0 0.0
        %1009 = vmatpush1.msra.mxu0 %v969
        %1010 = vmatprep.subr.mxu0 0.0
        %1011 = vmatpush1.msra.mxu0 %v968
        %1012 = vmatprep.subr.mxu0 0.0
        %1013 = vmatpush1.msra.mxu0 %v967
        %1014 = vmatprep.subr.mxu0 0.0
        %1015 = vmatpush1.msra.mxu0 %v966
        %1016 = vmatprep.subr.mxu0 0.0
        %1017 = vmatpush2.msra.mxu0 0.0
        %1018 = vmatprep.subr.mxu0 0.0
        %1019 = vmatpush2.msra.mxu0 0.0
        %1020 = vmatprep.subr.mxu0 0.0
        %1021 = vmatpush2.msra.mxu0 0.0
        %1022 = vmatprep.subr.mxu0 0.0
        %1023 = vmatpush2.msra.mxu0 0.0
        %1024 = vmatprep.subr.mxu0 0.0
        %1025 = vmatpush2.msra.mxu0 0.0
        %1026 = vmatprep.subr.mxu0 0.0
        %1027 = vmatpush2.msra.mxu0 0.0
        %1028 = vmatprep.subr.mxu0 0.0
        %1029 = vmatpush2.msra.mxu0 0.0
        %1030 = vmatprep.subr.mxu0 0.0
        %1031 = vmatpush2.msra.mxu0 0.0
        %1032 = vmatprep.subr.mxu0 0.0
        %1033 = vmatpush2.msra.mxu0 0.0
        %1034 = vmatprep.subr.mxu0 0.0
        %1035 = vmatpush2.msra.mxu0 0.0
        %1036 = vmatprep.subr.mxu0 0.0
        %1037 = vmatpush2.msra.mxu0 0.0
        %1038 = vmatprep.subr.mxu0 0.0
        %1039 = vmatpush2.msra.mxu0 0.0
        %1040 = vmatprep.subr.mxu0 0.0
        %1041 = vmatpush2.msra.mxu0 0.0
        %1042 = vmatprep.subr.mxu0 0.0
        %1043 = vmatpush2.msra.mxu0 0.0
        %1044 = vmatprep.subr.mxu0 0.0
        %1045 = vmatpush2.msra.mxu0 0.0
        %1046 = vmatprep.subr.mxu0 0.0
        %1047 = vmatpush2.msra.mxu0 0.0
        %1048 = vmatprep.mubr.f32.mxu0 0.0
        %1049 = vmatmul.mubr.f32.gmra.mxu0 %v982
        %v1050 = vpop.f32.mrf.mxu0
        %v1051 = vadd.f32 %v979, %v1050
        %v1052 = vpop.f32.mrf.mxu0
        %1053 = vdwg.mxu0
        %v1054 = vtanh.pop %v1051
        %v1055 = vld [vmem:[#allocation14] sm:$0xf]
        %v1056 = vld [vmem:[#allocation14 + $0x4] sm:$0xf]
        %v1057 = vld [vmem:[#allocation14 + $0x8] sm:$0xf]
        %v1058 = vld [vmem:[#allocation14 + $0xc] sm:$0xf]
        %v1059 = vld [vmem:[#allocation14 + $0x10] sm:$0xf]
        %v1060 = vld [vmem:[#allocation14 + $0x14] sm:$0xf]
        %v1061 = vld [vmem:[#allocation14 + $0x18] sm:$0xf]
        %v1062 = vld [vmem:[#allocation14 + $0x1c] sm:$0xf]
        %v1063 = vunpack.c.l.bf16 %v1055
        %v1064 = vunpack.c.l.bf16 %v1056
        %v1065 = vunpack.c.l.bf16 %v1057
        %v1066 = vunpack.c.l.bf16 %v1058
        %v1067 = vunpack.c.l.bf16 %v1059
        %v1068 = vunpack.c.l.bf16 %v1060
        %v1069 = vunpack.c.l.bf16 %v1061
        %v1070 = vunpack.c.l.bf16 %v1062
        %v1072 = vsel %vm908, %v1054, 0
        %1074 = vmatprep.subr.mxu0 0.0
        %1075 = vmatpush1.msra.mxu0 0.0
        %1076 = vmatprep.subr.mxu0 0.0
        %1077 = vmatpush1.msra.mxu0 0.0
        %1078 = vmatprep.subr.mxu0 0.0
        %1079 = vmatpush1.msra.mxu0 0.0
        %1080 = vmatprep.subr.mxu0 0.0
        %1081 = vmatpush1.msra.mxu0 0.0
        %1082 = vmatprep.subr.mxu0 0.0
        %1083 = vmatpush1.msra.mxu0 0.0
        %1084 = vmatprep.subr.mxu0 0.0
        %1085 = vmatpush1.msra.mxu0 0.0
        %1086 = vmatprep.subr.mxu0 0.0
        %1087 = vmatpush1.msra.mxu0 0.0
        %1088 = vmatprep.subr.mxu0 0.0
        %1089 = vmatpush1.msra.mxu0 0.0
        %1090 = vmatprep.subr.mxu0 0.0
        %1091 = vmatpush1.msra.mxu0 %v1070
        %1092 = vmatprep.subr.mxu0 0.0
        %1093 = vmatpush1.msra.mxu0 %v1069
        %1094 = vmatprep.subr.mxu0 0.0
        %1095 = vmatpush1.msra.mxu0 %v1068
        %1096 = vmatprep.subr.mxu0 0.0
        %1097 = vmatpush1.msra.mxu0 %v1067
        %1098 = vmatprep.subr.mxu0 0.0
        %1099 = vmatpush1.msra.mxu0 %v1066
        %1100 = vmatprep.subr.mxu0 0.0
        %1101 = vmatpush1.msra.mxu0 %v1065
        %1102 = vmatprep.subr.mxu0 0.0
        %1103 = vmatpush1.msra.mxu0 %v1064
        %1104 = vmatprep.subr.mxu0 0.0
        %1105 = vmatpush1.msra.mxu0 %v1063
        %1106 = vmatprep.subr.mxu0 0.0
        %1107 = vmatpush2.msra.mxu0 0.0
        %1108 = vmatprep.subr.mxu0 0.0
        %1109 = vmatpush2.msra.mxu0 0.0
        %1110 = vmatprep.subr.mxu0 0.0
        %1111 = vmatpush2.msra.mxu0 0.0
        %1112 = vmatprep.subr.mxu0 0.0
        %1113 = vmatpush2.msra.mxu0 0.0
        %1114 = vmatprep.subr.mxu0 0.0
        %1115 = vmatpush2.msra.mxu0 0.0
        %1116 = vmatprep.subr.mxu0 0.0
        %1117 = vmatpush2.msra.mxu0 0.0
        %1118 = vmatprep.subr.mxu0 0.0
        %1119 = vmatpush2.msra.mxu0 0.0
        %1120 = vmatprep.subr.mxu0 0.0
        %1121 = vmatpush2.msra.mxu0 0.0
        %1122 = vmatprep.subr.mxu0 0.0
        %1123 = vmatpush2.msra.mxu0 0.0
        %1124 = vmatprep.subr.mxu0 0.0
        %1125 = vmatpush2.msra.mxu0 0.0
        %1126 = vmatprep.subr.mxu0 0.0
        %1127 = vmatpush2.msra.mxu0 0.0
        %1128 = vmatprep.subr.mxu0 0.0
        %1129 = vmatpush2.msra.mxu0 0.0
        %1130 = vmatprep.subr.mxu0 0.0
        %1131 = vmatpush2.msra.mxu0 0.0
        %1132 = vmatprep.subr.mxu0 0.0
        %1133 = vmatpush2.msra.mxu0 0.0
        %1134 = vmatprep.subr.mxu0 0.0
        %1135 = vmatpush2.msra.mxu0 0.0
        %1136 = vmatprep.subr.mxu0 0.0
        %1137 = vmatpush2.msra.mxu0 0.0
        %1138 = vmatprep.mubr.f32.mxu0 0.0
        %1139 = vmatmul.mubr.f32.gmra.mxu0 %v1072
        %v1140 = vpop.f32.mrf.mxu0
        %v1141 = vadd.f32 0.0, %v1140
        %v1142 = vpop.f32.mrf.mxu0
        %1143 = vdwg.mxu0
        %1145 = vrot.lane.b32.xlu0 %v1141, 5
        %v1146 = vpop.permute.xlu0 %1145
        %vm1148 = vcmask 130088
        %1149 = vst.msk [vmem:[#allocation2] sm:$0xff] %vm1148, %v1146
        %1150 = vrot.lane.b32.xlu0 %v1141, 4
        %v1151 = vpop.permute.xlu0 %1150
        %vm1153 = vcmask 130080
        %1154 = vst.msk [vmem:[#allocation2 + $0x10] sm:$0xff] %vm1153, %v1151
        %1155 = vrot.lane.b32.xlu0 %v1141, 3
        %v1156 = vpop.permute.xlu0 %1155
        %vm1158 = vcmask 130072
        %1159 = vst.msk [vmem:[#allocation2 + $0x20] sm:$0xff] %vm1158, %v1156
        %1160 = vrot.lane.b32.xlu0 %v1141, 1
        %v1161 = vpop.permute.xlu0 %1160
        %vm1163 = vcmask 130056
        %1164 = vst.msk [vmem:[#allocation2 + $0x30] sm:$0xff] %vm1163, %v1161
        %1165 = vst.msk [vmem:[#allocation2 + $0x40] sm:$0xff] %vm543, %v1141
        %1166 = vrot.lane.b32.xlu0 %v1141, 127
        %v1167 = vpop.permute.xlu0 %1166
        %1169 = vst.msk [vmem:[#allocation2 + $0x50] sm:$0xff] %vm554, %v1167
        %1170 = vrot.lane.b32.xlu0 %v1141, 125
        %v1171 = vpop.permute.xlu0 %1170
        %vm1173 = vcmask 105472
        %1174 = vst.msk [vmem:[#allocation2 + $0x60] sm:$0xff] %vm1173, %v1171
        %1175 = vrot.lane.b32.xlu0 %v1141, 124
        %v1176 = vpop.permute.xlu0 %1175
        %vm1178 = vcmask 97280
        %1179 = vst.msk [vmem:[#allocation2 + $0x70] sm:$0xff] %vm1178, %v1176
        %1180 = vrot.lane.b32.xlu0 %v1141, 123
        %v1181 = vpop.permute.xlu0 %1180
        %vm1183 = vcmask 89088
        %1184 = vst.msk [vmem:[#allocation2 + $0x80] sm:$0xff] %vm1183, %v1181
        %v1185 = vld [vmem:[#allocation2] sm:$0xff]
        %v1186 = vld [vmem:[#allocation2 + $0x10] sm:$0xff]
        %v1187 = vld [vmem:[#allocation2 + $0x20] sm:$0xff]
        %v1188 = vld [vmem:[#allocation2 + $0x30] sm:$0xff]
        %v1189 = vld [vmem:[#allocation2 + $0x40] sm:$0xff]
        %v1190 = vld [vmem:[#allocation2 + $0x50] sm:$0xff]
        %v1191 = vld [vmem:[#allocation2 + $0x60] sm:$0xff]
        %v1192 = vld [vmem:[#allocation2 + $0x70] sm:$0xff]
        %v1193 = vld [vmem:[#allocation2 + $0x80] sm:$0xff]
        %v1194 = vld [vmem:[#allocation11] sm:$0xf]
        %v1195 = vld [vmem:[#allocation11 + $0x4] sm:$0xf]
        %v1196 = vld [vmem:[#allocation11 + $0x8] sm:$0xf]
        %v1197 = vld [vmem:[#allocation11 + $0xc] sm:$0xf]
        %v1198 = vld [vmem:[#allocation11 + $0x10] sm:$0xf]
        %v1199 = vld [vmem:[#allocation11 + $0x14] sm:$0xf]
        %v1200 = vld [vmem:[#allocation11 + $0x18] sm:$0xf]
        %v1201 = vld [vmem:[#allocation11 + $0x1c] sm:$0xf]
        %v1202 = vld [vmem:[#allocation11 + $0x20] sm:$0xf]
        %v1203 = vunpack.c.l.bf16 %v1194
        %v1204 = vunpack.c.l.bf16 %v1195
        %v1205 = vunpack.c.l.bf16 %v1196
        %v1206 = vunpack.c.l.bf16 %v1197
        %v1207 = vunpack.c.l.bf16 %v1198
        %v1208 = vunpack.c.l.bf16 %v1199
        %v1209 = vunpack.c.l.bf16 %v1200
        %v1210 = vunpack.c.l.bf16 %v1201
        %v1211 = vunpack.c.l.bf16 %v1202
        %vm1212 = vcmp.ne.f32.partialorder %v1203, 0.0
        %vm1213 = vcmp.ne.f32.partialorder %v1204, 0.0
        %vm1214 = vcmp.ne.f32.partialorder %v1205, 0.0
        %vm1215 = vcmp.ne.f32.partialorder %v1206, 0.0
        %vm1216 = vcmp.ne.f32.partialorder %v1207, 0.0
        %vm1217 = vcmp.ne.f32.partialorder %v1208, 0.0
        %vm1218 = vcmp.ne.f32.partialorder %v1209, 0.0
        %vm1219 = vcmp.ne.f32.partialorder %v1210, 0.0
        %vm1220 = vcmp.ne.f32.partialorder %v1211, 0.0
        %v1221 = vsel %vm1212, %v1185, 0.0
        %v1222 = vsel %vm1213, %v1186, 0.0
        %v1223 = vsel %vm1214, %v1187, 0.0
        %v1224 = vsel %vm1215, %v1188, 0.0
        %v1225 = vsel %vm1216, %v1189, 0.0
        %v1226 = vsel %vm1217, %v1190, 0.0
        %v1227 = vsel %vm1218, %v1191, 0.0
        %v1228 = vsel %vm1219, %v1192, 0.0
        %v1229 = vsel %vm1220, %v1193, 0.0
        %v1230 = vld [vmem:[%s5] sm:$0xff]
        %1232 = vset.pattern.permute.xlu0 72
        %1233 = vperm.xlu0 %1232, %v1230
        %v1234 = vpop.permute.xlu0 %1233
        %v1236 = vsel %vm981, %v1230, 0
        %1238 = vmatprep.subr.mxu0 0.0
        %1239 = vmatpush1.msra.mxu0 0.0
        %1240 = vmatprep.subr.mxu0 0.0
        %1241 = vmatpush1.msra.mxu0 0.0
        %1242 = vmatprep.subr.mxu0 0.0
        %1243 = vmatpush1.msra.mxu0 0.0
        %1244 = vmatprep.subr.mxu0 0.0
        %1245 = vmatpush1.msra.mxu0 0.0
        %1246 = vmatprep.subr.mxu0 0.0
        %1247 = vmatpush1.msra.mxu0 0.0
        %1248 = vmatprep.subr.mxu0 0.0
        %1249 = vmatpush1.msra.mxu0 0.0
        %1250 = vmatprep.subr.mxu0 0.0
        %1251 = vmatpush1.msra.mxu0 0.0
        %1252 = vmatprep.subr.mxu0 0.0
        %1253 = vmatpush1.msra.mxu0 %v1229
        %1254 = vmatprep.subr.mxu0 0.0
        %1255 = vmatpush1.msra.mxu0 %v1228
        %1256 = vmatprep.subr.mxu0 0.0
        %1257 = vmatpush1.msra.mxu0 %v1227
        %1258 = vmatprep.subr.mxu0 0.0
        %1259 = vmatpush1.msra.mxu0 %v1226
        %1260 = vmatprep.subr.mxu0 0.0
        %1261 = vmatpush1.msra.mxu0 %v1225
        %1262 = vmatprep.subr.mxu0 0.0
        %1263 = vmatpush1.msra.mxu0 %v1224
        %1264 = vmatprep.subr.mxu0 0.0
        %1265 = vmatpush1.msra.mxu0 %v1223
        %1266 = vmatprep.subr.mxu0 0.0
        %1267 = vmatpush1.msra.mxu0 %v1222
        %1268 = vmatprep.subr.mxu0 0.0
        %1269 = vmatpush1.msra.mxu0 %v1221
        %1270 = vmatprep.subr.mxu0 0.0
        %1271 = vmatpush2.msra.mxu0 0.0
        %1272 = vmatprep.subr.mxu0 0.0
        %1273 = vmatpush2.msra.mxu0 0.0
        %1274 = vmatprep.subr.mxu0 0.0
        %1275 = vmatpush2.msra.mxu0 0.0
        %1276 = vmatprep.subr.mxu0 0.0
        %1277 = vmatpush2.msra.mxu0 0.0
        %1278 = vmatprep.subr.mxu0 0.0
        %1279 = vmatpush2.msra.mxu0 0.0
        %1280 = vmatprep.subr.mxu0 0.0
        %1281 = vmatpush2.msra.mxu0 0.0
        %1282 = vmatprep.subr.mxu0 0.0
        %1283 = vmatpush2.msra.mxu0 0.0
        %1284 = vmatprep.subr.mxu0 0.0
        %1285 = vmatpush2.msra.mxu0 0.0
        %1286 = vmatprep.subr.mxu0 0.0
        %1287 = vmatpush2.msra.mxu0 0.0
        %1288 = vmatprep.subr.mxu0 0.0
        %1289 = vmatpush2.msra.mxu0 0.0
        %1290 = vmatprep.subr.mxu0 0.0
        %1291 = vmatpush2.msra.mxu0 0.0
        %1292 = vmatprep.subr.mxu0 0.0
        %1293 = vmatpush2.msra.mxu0 0.0
        %1294 = vmatprep.subr.mxu0 0.0
        %1295 = vmatpush2.msra.mxu0 0.0
        %1296 = vmatprep.subr.mxu0 0.0
        %1297 = vmatpush2.msra.mxu0 0.0
        %1298 = vmatprep.subr.mxu0 0.0
        %1299 = vmatpush2.msra.mxu0 0.0
        %1300 = vmatprep.subr.mxu0 0.0
        %1301 = vmatpush2.msra.mxu0 0.0
        %1302 = vmatprep.mubr.f32.mxu0 0.0
        %1303 = vmatmul.mubr.f32.gmra.mxu0 %v1236
        %v1304 = vpop.f32.mrf.mxu0
        %v1305 = vadd.f32 %v1234, %v1304
        %v1306 = vpop.f32.mrf.mxu0
        %1307 = vdwg.mxu0
        %v1308 = vtanh.pop %v1305
        %v1309 = vld [vmem:[%s9] sm:$0xf]
        %v1310 = vld [vmem:[%s9 + $0x4] sm:$0xf]
        %v1311 = vld [vmem:[%s9 + $0x8] sm:$0xf]
        %v1312 = vunpack.c.l.bf16 %v1309
        %v1313 = vunpack.c.l.bf16 %v1310
        %v1314 = vunpack.c.l.bf16 %v1311
        %v1316 = vsel %vm543, %v1308, 0
        %1318 = vmatprep.subr.mxu0 0.0
        %1319 = vmatpush1.msra.mxu0 0.0
        %1320 = vmatprep.subr.mxu0 0.0
        %1321 = vmatpush1.msra.mxu0 0.0
        %1322 = vmatprep.subr.mxu0 0.0
        %1323 = vmatpush1.msra.mxu0 0.0
        %1324 = vmatprep.subr.mxu0 0.0
        %1325 = vmatpush1.msra.mxu0 0.0
        %1326 = vmatprep.subr.mxu0 0.0
        %1327 = vmatpush1.msra.mxu0 0.0
        %1328 = vmatprep.subr.mxu0 0.0
        %1329 = vmatpush1.msra.mxu0 0.0
        %1330 = vmatprep.subr.mxu0 0.0
        %1331 = vmatpush1.msra.mxu0 0.0
        %1332 = vmatprep.subr.mxu0 0.0
        %1333 = vmatpush1.msra.mxu0 0.0
        %1334 = vmatprep.subr.mxu0 0.0
        %1335 = vmatpush1.msra.mxu0 0.0
        %1336 = vmatprep.subr.mxu0 0.0
        %1337 = vmatpush1.msra.mxu0 0.0
        %1338 = vmatprep.subr.mxu0 0.0
        %1339 = vmatpush1.msra.mxu0 0.0
        %1340 = vmatprep.subr.mxu0 0.0
        %1341 = vmatpush1.msra.mxu0 0.0
        %1342 = vmatprep.subr.mxu0 0.0
        %1343 = vmatpush1.msra.mxu0 0.0
        %1344 = vmatprep.subr.mxu0 0.0
        %1345 = vmatpush1.msra.mxu0 0.0
        %1346 = vmatprep.subr.mxu0 0.0
        %1347 = vmatpush1.msra.mxu0 %v1313
        %1348 = vmatprep.subr.mxu0 0.0
        %1349 = vmatpush1.msra.mxu0 %v1312
        %1350 = vmatprep.subr.mxu0 0.0
        %1351 = vmatpush2.msra.mxu0 0.0
        %1352 = vmatprep.subr.mxu0 0.0
        %1353 = vmatpush2.msra.mxu0 0.0
        %1354 = vmatprep.subr.mxu0 0.0
        %1355 = vmatpush2.msra.mxu0 0.0
        %1356 = vmatprep.subr.mxu0 0.0
        %1357 = vmatpush2.msra.mxu0 0.0
        %1358 = vmatprep.subr.mxu0 0.0
        %1359 = vmatpush2.msra.mxu0 0.0
        %1360 = vmatprep.subr.mxu0 0.0
        %1361 = vmatpush2.msra.mxu0 0.0
        %1362 = vmatprep.subr.mxu0 0.0
        %1363 = vmatpush2.msra.mxu0 0.0
        %1364 = vmatprep.subr.mxu0 0.0
        %1365 = vmatpush2.msra.mxu0 0.0
        %1366 = vmatprep.subr.mxu0 0.0
        %1367 = vmatpush2.msra.mxu0 0.0
        %1368 = vmatprep.subr.mxu0 0.0
        %1369 = vmatpush2.msra.mxu0 0.0
        %1370 = vmatprep.subr.mxu0 0.0
        %1371 = vmatpush2.msra.mxu0 0.0
        %1372 = vmatprep.subr.mxu0 0.0
        %1373 = vmatpush2.msra.mxu0 0.0
        %1374 = vmatprep.subr.mxu0 0.0
        %1375 = vmatpush2.msra.mxu0 0.0
        %1376 = vmatprep.subr.mxu0 0.0
        %1377 = vmatpush2.msra.mxu0 0.0
        %1378 = vmatprep.subr.mxu0 0.0
        %1379 = vmatpush2.msra.mxu0 0.0
        %1380 = vmatprep.subr.mxu0 0.0
        %1381 = vmatpush2.msra.mxu0 0.0
        %1382 = vmatprep.mubr.f32.mxu0 0.0
        %1383 = vmatmul.mubr.f32.gmra.mxu0 %v1316
        %v1384 = vpop.f32.mrf.mxu0
        %v1385 = vadd.f32 0.0, %v1384
        %v1386 = vpop.f32.mrf.mxu0
        %1387 = vdwg.mxu0
        %v1388 = vmul.f32 %v1314, %v1385
        %v1389 = vrot.slane %v1388, 4
        %v1390 = vadd.f32 %v1388, %v1389
        %v1391 = vrot.slane %v1390, 2
        %v1392 = vadd.f32 %v1390, %v1391
        %v1393 = vrot.slane %v1392, 1
        %v1394 = vadd.f32 %v1392, %v1393
        %v1395 = vld [vmem:[%s10] sm:$0xff]
        %v1396 = vld [vmem:[%s10 + $0x8] sm:$0xff]
        %v1397 = vld [vmem:[%s10 + $0x10] sm:$0xff]
        %v1398 = vld [vmem:[%s10 + $0x18] sm:$0xff]
        %v1399 = vld [vmem:[%s10 + $0x20] sm:$0xff]
        %v1400 = vld [vmem:[%s10 + $0x28] sm:$0xff]
        %v1401 = vld [vmem:[%s10 + $0x30] sm:$0xff]
        %v1402 = vld [vmem:[%s10 + $0x38] sm:$0xff]
        %v1403 = vld [vmem:[%s10 + $0x40] sm:$0xff]
        %v1404 = vld [vmem:[%s10 + $0x48] sm:$0xff]
        %v1405 = vld [vmem:[%s10 + $0x50] sm:$0xff]
        %v1406 = vld [vmem:[%s10 + $0x58] sm:$0xff]
        %v1407 = vld [vmem:[%s10 + $0x60] sm:$0xff]
        %v1408 = vld [vmem:[%s10 + $0x68] sm:$0xff]
        %v1409 = vld [vmem:[%s10 + $0x70] sm:$0xff]
        %v1410 = vld [vmem:[%s10 + $0x78] sm:$0xff]
        %v1411 = vld [vmem:[%s10 + $0x80] sm:$0x1]
        %1412 = vmatprep.subr.mxu0 0.0
        %1413 = vmatpush1.msra.mxu0 %v1410
        %1414 = vmatprep.subr.mxu0 0.0
        %1415 = vmatpush1.msra.mxu0 %v1409
        %1416 = vmatprep.subr.mxu0 0.0
        %1417 = vmatpush1.msra.mxu0 %v1408
        %1418 = vmatprep.subr.mxu0 0.0
        %1419 = vmatpush1.msra.mxu0 %v1407
        %1420 = vmatprep.subr.mxu0 0.0
        %1421 = vmatpush1.msra.mxu0 %v1406
        %1422 = vmatprep.subr.mxu0 0.0
        %1423 = vmatpush1.msra.mxu0 %v1405
        %1424 = vmatprep.subr.mxu0 0.0
        %1425 = vmatpush1.msra.mxu0 %v1404
        %1426 = vmatprep.subr.mxu0 0.0
        %1427 = vmatpush1.msra.mxu0 %v1403
        %1428 = vmatprep.subr.mxu0 0.0
        %1429 = vmatpush1.msra.mxu0 %v1402
        %1430 = vmatprep.subr.mxu0 0.0
        %1431 = vmatpush1.msra.mxu0 %v1401
        %1432 = vmatprep.subr.mxu0 0.0
        %1433 = vmatpush1.msra.mxu0 %v1400
        %1434 = vmatprep.subr.mxu0 0.0
        %1435 = vmatpush1.msra.mxu0 %v1399
        %1436 = vmatprep.subr.mxu0 0.0
        %1437 = vmatpush1.msra.mxu0 %v1398
        %1438 = vmatprep.subr.mxu0 0.0
        %1439 = vmatpush1.msra.mxu0 %v1397
        %1440 = vmatprep.subr.mxu0 0.0
        %1441 = vmatpush1.msra.mxu0 %v1396
        %1442 = vmatprep.subr.mxu0 0.0
        %1443 = vmatpush1.msra.mxu0 %v1395
        %1444 = vmatprep.subr.mxu0 0.0
        %1445 = vmatpush2.msra.mxu0 0.0
        %1446 = vmatprep.subr.mxu0 0.0
        %1447 = vmatpush2.msra.mxu0 0.0
        %1448 = vmatprep.subr.mxu0 0.0
        %1449 = vmatpush2.msra.mxu0 0.0
        %1450 = vmatprep.subr.mxu0 0.0
        %1451 = vmatpush2.msra.mxu0 0.0
        %1452 = vmatprep.subr.mxu0 0.0
        %1453 = vmatpush2.msra.mxu0 0.0
        %1454 = vmatprep.subr.mxu0 0.0
        %1455 = vmatpush2.msra.mxu0 0.0
        %1456 = vmatprep.subr.mxu0 0.0
        %1457 = vmatpush2.msra.mxu0 0.0
        %1458 = vmatprep.subr.mxu0 0.0
        %1459 = vmatpush2.msra.mxu0 0.0
        %1460 = vmatprep.subr.mxu0 0.0
        %1461 = vmatpush2.msra.mxu0 0.0
        %1462 = vmatprep.subr.mxu0 0.0
        %1463 = vmatpush2.msra.mxu0 0.0
        %1464 = vmatprep.subr.mxu0 0.0
        %1465 = vmatpush2.msra.mxu0 0.0
        %1466 = vmatprep.subr.mxu0 0.0
        %1467 = vmatpush2.msra.mxu0 0.0
        %1468 = vmatprep.subr.mxu0 0.0
        %1469 = vmatpush2.msra.mxu0 0.0
        %1470 = vmatprep.subr.mxu0 0.0
        %1471 = vmatpush2.msra.mxu0 0.0
        %1472 = vmatprep.subr.mxu0 0.0
        %1473 = vmatpush2.msra.mxu0 0.0
        %1474 = vmatprep.subr.mxu0 0.0
        %1475 = vmatpush2.msra.mxu0 0.0
        %1476 = vmatprep.mubr.f32.mxu0 0.0
        %1477 = vmatmul.mubr.f32.gmra.mxu0 %v1394
        %v1478 = vpop.f32.mrf.mxu0
        %v1479 = vadd.f32 %v1411, %v1478
        %v1480 = vpop.f32.mrf.mxu0
        %1481 = vdwg.mxu0
        %v1482 = vtanh.pop %v1479
        %v1483 = vld [vmem:[#allocation15] sm:$0xff]
        %v1484 = vld [vmem:[#allocation15 + $0x8] sm:$0xff]
        %v1485 = vld [vmem:[#allocation15 + $0x10] sm:$0xff]
        %v1486 = vld [vmem:[#allocation15 + $0x18] sm:$0xff]
        %v1487 = vld [vmem:[#allocation15 + $0x20] sm:$0x1]
        %vm1488 = vcmask 261120
        %v1490 = vsel %vm1488, %v1482, 0
        %1492 = vmatprep.subr.mxu0 0.0
        %1493 = vmatpush1.msra.mxu0 0.0
        %1494 = vmatprep.subr.mxu0 0.0
        %1495 = vmatpush1.msra.mxu0 0.0
        %1496 = vmatprep.subr.mxu0 0.0
        %1497 = vmatpush1.msra.mxu0 0.0
        %1498 = vmatprep.subr.mxu0 0.0
        %1499 = vmatpush1.msra.mxu0 0.0
        %1500 = vmatprep.subr.mxu0 0.0
        %1501 = vmatpush1.msra.mxu0 0.0
        %1502 = vmatprep.subr.mxu0 0.0
        %1503 = vmatpush1.msra.mxu0 0.0
        %1504 = vmatprep.subr.mxu0 0.0
        %1505 = vmatpush1.msra.mxu0 0.0
        %1506 = vmatprep.subr.mxu0 0.0
        %1507 = vmatpush1.msra.mxu0 0.0
        %1508 = vmatprep.subr.mxu0 0.0
        %1509 = vmatpush1.msra.mxu0 0.0
        %1510 = vmatprep.subr.mxu0 0.0
        %1511 = vmatpush1.msra.mxu0 0.0
        %1512 = vmatprep.subr.mxu0 0.0
        %1513 = vmatpush1.msra.mxu0 0.0
        %1514 = vmatprep.subr.mxu0 0.0
        %1515 = vmatpush1.msra.mxu0 0.0
        %1516 = vmatprep.subr.mxu0 0.0
        %1517 = vmatpush1.msra.mxu0 %v1486
        %1518 = vmatprep.subr.mxu0 0.0
        %1519 = vmatpush1.msra.mxu0 %v1485
        %1520 = vmatprep.subr.mxu0 0.0
        %1521 = vmatpush1.msra.mxu0 %v1484
        %1522 = vmatprep.subr.mxu0 0.0
        %1523 = vmatpush1.msra.mxu0 %v1483
        %1524 = vmatprep.subr.mxu0 0.0
        %1525 = vmatpush2.msra.mxu0 0.0
        %1526 = vmatprep.subr.mxu0 0.0
        %1527 = vmatpush2.msra.mxu0 0.0
        %1528 = vmatprep.subr.mxu0 0.0
        %1529 = vmatpush2.msra.mxu0 0.0
        %1530 = vmatprep.subr.mxu0 0.0
        %1531 = vmatpush2.msra.mxu0 0.0
        %1532 = vmatprep.subr.mxu0 0.0
        %1533 = vmatpush2.msra.mxu0 0.0
        %1534 = vmatprep.subr.mxu0 0.0
        %1535 = vmatpush2.msra.mxu0 0.0
        %1536 = vmatprep.subr.mxu0 0.0
        %1537 = vmatpush2.msra.mxu0 0.0
        %1538 = vmatprep.subr.mxu0 0.0
        %1539 = vmatpush2.msra.mxu0 0.0
        %1540 = vmatprep.subr.mxu0 0.0
        %1541 = vmatpush2.msra.mxu0 0.0
        %1542 = vmatprep.subr.mxu0 0.0
        %1543 = vmatpush2.msra.mxu0 0.0
        %1544 = vmatprep.subr.mxu0 0.0
        %1545 = vmatpush2.msra.mxu0 0.0
        %1546 = vmatprep.subr.mxu0 0.0
        %1547 = vmatpush2.msra.mxu0 0.0
        %1548 = vmatprep.subr.mxu0 0.0
        %1549 = vmatpush2.msra.mxu0 0.0
        %1550 = vmatprep.subr.mxu0 0.0
        %1551 = vmatpush2.msra.mxu0 0.0
        %1552 = vmatprep.subr.mxu0 0.0
        %1553 = vmatpush2.msra.mxu0 0.0
        %1554 = vmatprep.subr.mxu0 0.0
        %1555 = vmatpush2.msra.mxu0 0.0
        %1556 = vmatprep.mubr.f32.mxu0 0.0
        %1557 = vmatmul.mubr.f32.gmra.mxu0 %v1490
        %v1558 = vpop.f32.mrf.mxu0
        %v1559 = vadd.f32 %v1487, %v1558
        %v1560 = vpop.f32.mrf.mxu0
        %1561 = vdwg.mxu0
        %v1562 = vtanh.pop %v1559
        %1563 = vst [vmem:[%s518] sm:$0x1] %v1562
        %s1564 = sand.u32 %s296, 1
        %s1565 = scalar_lea.sflag [#allocation5], %s1564
        %s1566 = sand.u32 %s296, 1
        %s1567 = scalar_lea.vmem [#allocation17], %s1566
        // Predicated region
        $region101: #{landslide_cnn_forward.1} parent=67 // pred_check
          %p1568 = pneg %p306
        $region102: #{landslide_cnn_forward.1} parent=67 // pred_check_branch
          %1570 = sbr.rel (%p1568) target = $region104
        $region103: #{landslide_cnn_forward.1} parent=67 // pred_region
          %s1572 = ssub.s32 16, 16
          %1573 = vsyncadd %s1565, %s1572
          %s1574 = smul.addr %s31, 16
          %s1575 = scalar_lea.hbm %s12, %s1574
          %s1577 = sshll.u32 %s1567, 4
          %s1578 = int_to_ptr.vmem [resolvable:$true] %s1577
          %1580 = dma.vmem_to_hbm [thread:$0]  %s1578, 16, %s1575, %s1565
        $region104: #{landslide_cnn_forward.1} parent=67 // pred_fallthru
          _
      $region68: #{landslide_cnn_forward.1} parent=5 // pred_fallthru
        _
      %p1581 = scmp.le.s32.totalorder 2, %s26
      // Predicated region
      $region105: #{landslide_cnn_forward.1} parent=5 // pred_check
        %p1582 = pneg %p1581
      $region106: #{landslide_cnn_forward.1} parent=5 // pred_check_branch
        %1584 = sbr.rel (%p1582) target = $region108
      $region107: #{landslide_cnn_forward.1} parent=5 // pred_region
        %s1585 = ssub.s32 %s26, 2
        // Predicated region
        $region109: #{landslide_cnn_forward.1} parent=107 // pred_check
          %p1586 = pneg %p312
        $region110: #{landslide_cnn_forward.1} parent=107 // pred_check_branch
          %1588 = sbr.rel (%p1586) target = $region112
        $region111: #{landslide_cnn_forward.1} parent=107 // pred_region
          %s1589 = sand.u32 %s297, 1
          %s1590 = scalar_lea.sflag [#allocation5], %s1589
          %s1591 = sand.u32 %s297, 1
          %s1592 = scalar_lea.vmem [#allocation17], %s1591
          %1593 = dma.done %s1590, 16
        $region112: #{landslide_cnn_forward.1} parent=107 // pred_fallthru
          _
      $region108: #{landslide_cnn_forward.1} parent=5 // pred_fallthru
        _
    $region6: #{landslide_cnn_forward.1} parent=1 // loop_footer
      %s30 = sadd.s32 1, %s26
    $region7: #{landslide_cnn_forward.1} parent=1 // loop_footer_branch
      %25 = sbr.rel target = $region3
    $region8: #{landslide_cnn_forward.1} parent=1 // loop_exit
      _
    %1594 = vsyncpa [#allocation4], 1
    %s1595 = scalar_lea.sflag [#allocation4], 1
    %1596 = vsyncpa %s1595, 1
    %1597 = vsyncpa [#allocation7], 1
    %1598 = vsyncpa [#allocation10], 1
    %1599 = vsyncpa [#allocation13], 1
    %1600 = vsyncpa [#allocation16], 1
    %1601 = vsyncpa [#allocation5], 1
    %s1602 = scalar_lea.sflag [#allocation5], 1
    %1603 = vsyncpa %s1602, 1

</llo_original>
